<compile_context>
chip_gen: v5e
topology: v5e:2x2
jax: 0.10.0
libtpu: 0.0.40
codegen_flags: <defaults>
</compile_context>

<pallas_src>
import math

import jax
import jax.numpy as jnp
from jax import lax
from jax.experimental import pallas as pl
from jax.experimental.pallas import tpu as pltpu


# ----------------------------------------------------------------------------- kernel

def _recurrent_kernel(obs_ref, wcomb0_ref, bcomb0_ref, wih_t_ref, bias_ref,
                      whh_t_ref, w2t_ref, b2_ref, h0_ref, c0_ref,
                      logits_ref, hidden_ref, cell_ref):
    """(fc1-folded) multi-layer LSTM (batch_first) -> fc2 on the last time step."""
    L, B, H = h0_ref.shape
    G = 4 * H
    T = obs_ref.shape[0] // B

    # Layer-0 input-to-hidden projection for ALL T steps in one matmul (fc1 folded in
    # on the host).  Off the serial recurrence chain; lives in vregs, no scratch.
    gx0 = (jnp.dot(obs_ref[...], wcomb0_ref[...],
                   preferred_element_type=jnp.float32) + bcomb0_ref[...])

    # Gate-nonlinearity lane mask, hoisted once: lanes [2H,3H) are the g gate (tanh),
    # the rest (i,f,o) are sigmoid.  Two full-vreg EUP calls + one select per step
    # instead of four quarter-width EUP calls.
    lane = lax.broadcasted_iota(jnp.int32, (B, G), 1)
    g_mask = (lane >= 2 * H) & (lane < 3 * H)

    def lstm_cell(gates, c_prev):
        sg = jax.nn.sigmoid(gates)
        tg = jnp.tanh(gates)
        act = jnp.where(g_mask, tg, sg)
        i_g = act[:, 0 * H:1 * H]
        f_g = act[:, 1 * H:2 * H]
        g_g = act[:, 2 * H:3 * H]
        o_g = act[:, 3 * H:4 * H]
        c_new = f_g * c_prev + i_g * g_g
        h_new = o_g * jnp.tanh(c_new)
        return h_new, c_new

    h = [h0_ref[l] for l in range(L)]
    c = [c0_ref[l] for l in range(L)]
    x = [None] * L          # x[l]: layer-(l-1) output feeding layer l's next step

    # Wavefront over (layer, time) diagonals: step (l, t) depends only on (l, t-1)
    # and (l-1, t), so the true serial depth is T + L - 1 instead of T * L.  Fully
    # unrolled plain values => one basic block, the LLO scheduler overlaps the
    # independent per-layer MXU pushes along each diagonal.
    for d in range(T + L - 1):
        for l in range(min(L - 1, d), -1, -1):      # upper layers first in a diagonal
            t = d - l
            if t < 0 or t >= T:
                continue
            if l == 0:
                gin = gx0[t * B:(t + 1) * B, :]                     # static row slice
            else:
                # Per-step input-to-hidden for upper layers (off this layer's chain).
                gin = (jnp.dot(x[l], wih_t_ref[l],
                               preferred_element_type=jnp.float32) + bias_ref[l])
            gates = gin + jnp.dot(h[l], whh_t_ref[l],
                                  preferred_element_type=jnp.float32)
            h[l], c[l] = lstm_cell(gates, c[l])
            if l + 1 < L:
                x[l + 1] = h[l]
    # TODO(synk): keep each layer's Whh resident in MXU weight registers across its
    # T steps via pltpu.matmul_push_rhs/matmul_acc_lhs/matmul_pop (distinct staging
    # registers per layer); jnp.dot re-stages the tiny weight every step.

    for l in range(L):
        hidden_ref[l] = h[l]
        cell_ref[l] = c[l]

    # fc2 on the last time step of the top layer.
    logits_ref[...] = (jnp.dot(h[L - 1], w2t_ref[...],
                               preferred_element_type=jnp.float32) + b2_ref[...])


# ----------------------------------------------------------------------------- wrapper

def _preprocess_obs(obs, state_shape):
    """Mirror the PyTorch squeeze / flatten / unsqueeze preamble (glue, not kernel)."""
    obs = jnp.asarray(obs, jnp.float32)
    if obs.shape[0] == 1:
        obs = jnp.expand_dims(jnp.squeeze(obs), 0)
    else:
        obs = jnp.squeeze(obs)
    obs = obs.reshape(obs.shape[:-len(state_shape)] + (-1,))   # flatten state dims
    if obs.ndim == 2:                                          # eval mode -> len-1 seq
        obs = obs[:, None, :]
    return obs


def prepare_params(params):
    """One-time host-side weight massaging, hoisted out of the per-call forward path."""
    L = params["w_ih"].shape[0]
    H = params["w_hh"].shape[-1]
    w1t = params["w1"].T                                  # [S, H]
    wih0_t = params["w_ih"][0].T                          # [H, 4H]
    # fc1 folded into layer-0's input-to-hidden projection:
    #   (obs @ W1^T + b1) @ Wih0^T + b  ==  obs @ (W1^T @ Wih0^T) + (b1 @ Wih0^T + b)
    wcomb0 = jnp.asarray(w1t @ wih0_t, jnp.float32)                       # [S, 4H]
    bcomb0 = jnp.asarray(params["b1"] @ wih0_t + params["b_ih"][0]
                         + params["b_hh"][0], jnp.float32).reshape(1, 4 * H)
    return {
        "wcomb0": wcomb0,
        "bcomb0": bcomb0,
        "wih_t": jnp.transpose(params["w_ih"], (0, 2, 1)),                # [L, H, 4H]
        "bias": (params["b_ih"] + params["b_hh"]).reshape(L, 1, 4 * H),   # [L, 1, 4H]
        "whh_t": jnp.transpose(params["w_hh"], (0, 2, 1)),                # [L, H, 4H]
        "w2t": params["w2"].T,                                            # [H, A]
        "b2": params["b2"].reshape(1, -1),                                # [1, A]
    }


def recurrent_forward(prep, obs, state_shape, state=None):
    obs3 = _preprocess_obs(obs, state_shape)          # [B, T, S]
    B, T, S = obs3.shape
    L, H, G = prep["whh_t"].shape
    A = prep["w2t"].shape[1]

    # Time-major, 2-D layout: per-step accesses become static row slices of a
    # lane-dense [T*B, 4H] projection (no in-kernel transpose, no padded time tiles).
    obs2d = jnp.transpose(obs3, (1, 0, 2)).reshape(T * B, S)

    if state is None:
        h0 = jnp.zeros((L, B, H), jnp.float32)
        c0 = jnp.zeros((L, B, H), jnp.float32)
    else:
        h0 = jnp.transpose(state["hidden"], (1, 0, 2)).astype(jnp.float32)
        c0 = jnp.transpose(state["cell"], (1, 0, 2)).astype(jnp.float32)

    in_arrays = (obs2d, prep["wcomb0"], prep["bcomb0"], prep["wih_t"], prep["bias"],
                 prep["whh_t"], prep["w2t"], prep["b2"], h0, c0)

    out_shape = (
        jax.ShapeDtypeStruct((B, A), jnp.float32),    # logits
        jax.ShapeDtypeStruct((L, B, H), jnp.float32), # hidden (layer-major)
        jax.ShapeDtypeStruct((L, B, H), jnp.float32), # cell   (layer-major)
    )

    vmem = pl.BlockSpec(memory_space=pltpu.MemorySpace.VMEM)

    # TODO(synk): for large RL rollout batches add a batch-tile grid axis marked
    # "parallel" (v7x has 2 TensorCores), block the layer-0 projection along T so the
    # [T*B, 4H] slab stays inside v7x's 64 MiB VMEM, and pass
    # pltpu.CompilerParams(vmem_limit_bytes=...) sized for v5e's 16 MiB scoped
    # default; irrelevant at these demo sizes (everything fits in a few vregs).
    logits, hidden, cell = pl.pallas_call(
        _recurrent_kernel,
        out_shape=out_shape,
        in_specs=[vmem] * len(in_arrays),
        out_specs=(vmem, vmem, vmem),
    )(*in_arrays)

    return logits, {
        "hidden": jnp.transpose(hidden, (1, 0, 2)),   # [B, L, H]
        "cell": jnp.transpose(cell, (1, 0, 2)),
    }


# ----------------------------------------------------------------------------- params

def init_params(key, state_shape, action_shape, layer_num, hidden_layer_size):
    """Deterministic init mimicking PyTorch's uniform(-1/sqrt(fan), 1/sqrt(fan))."""
    S = math.prod(state_shape)
    A = math.prod(action_shape)
    H = hidden_layer_size
    ks = jax.random.split(key, 8)

    def u(k, shape, fan):
        b = 1.0 / math.sqrt(fan)
        return jax.random.uniform(k, shape, jnp.float32, -b, b)

    return {
        "w1": u(ks[0], (H, S), S), "b1": u(ks[1], (H,), S),
        "w_ih": u(ks[2], (layer_num, 4 * H, H), H),
        "w_hh": u(ks[3], (layer_num, 4 * H, H), H),
        "b_ih": u(ks[4], (layer_num, 4 * H), H),
        "b_hh": u(ks[5], (layer_num, 4 * H), H),
        "w2": u(ks[6], (A, H), H), "b2": u(ks[7], (A,), H),
    }


# ----------------------------------------------------------------------------- reference

def recurrent_reference(params, obs, state_shape, state=None):
    obs3 = _preprocess_obs(obs, state_shape)
    B, T, S = obs3.shape
    L = params["w_ih"].shape[0]
    H = params["w_hh"].shape[-1]

    x = obs3 @ params["w1"].T + params["b1"]          # [B, T, H]
    if state is None:
        h0 = jnp.zeros((L, B, H), jnp.float32)
        c0 = jnp.zeros((L, B, H), jnp.float32)
    else:
        h0 = jnp.transpose(state["hidden"], (1, 0, 2))
        c0 = jnp.transpose(state["cell"], (1, 0, 2))

    inp = x
    hs, cs = [], []
    for l in range(L):
        wih, whh = params["w_ih"][l], params["w_hh"][l]
        b = params["b_ih"][l] + params["b_hh"][l]
        h, c = h0[l], c0[l]
        outs = []
        for t in range(T):
            gates = inp[:, t] @ wih.T + h @ whh.T + b
            i_g = jax.nn.sigmoid(gates[:, 0 * H:1 * H])
            f_g = jax.nn.sigmoid(gates[:, 1 * H:2 * H])
            g_g = jnp.tanh(gates[:, 2 * H:3 * H])
            o_g = jax.nn.sigmoid(gates[:, 3 * H:4 * H])
            c = f_g * c + i_g * g_g
            h = o_g * jnp.tanh(c)
            outs.append(h)
        inp = jnp.stack(outs, axis=1)
        hs.append(h)
        cs.append(c)

    logits = inp[:, -1] @ params["w2"].T + params["b2"]
    hidden = jnp.stack(hs, axis=0).transpose(1, 0, 2)
    cell = jnp.stack(cs, axis=0).transpose(1, 0, 2)
    return logits, {"hidden": hidden, "cell": cell}


# ----------------------------------------------------------------------------- main

if __name__ == "__main__":
    key = jax.random.PRNGKey(0)
    k_param, k_obs = jax.random.split(key)

    layer_num = 2
    hidden_layer_size = 32
    state_shape = (4, 4)        # flattens to S = 16
    action_shape = (4,)
    B, T = 2, 8

    params = init_params(k_param, state_shape, action_shape, layer_num, hidden_layer_size)
    prep = prepare_params(params)          # one-time; out of the per-call forward path
    obs = jax.random.normal(k_obs, (B, T) + state_shape, jnp.float32)

    logits, new_state = recurrent_forward(prep, obs, state_shape, state=None)
    jax.block_until_ready((logits, new_state))

    ref_logits, ref_state = recurrent_reference(params, obs, state_shape, state=None)

    assert logits.shape == (B, math.prod(action_shape))
    assert new_state["hidden"].shape == (B, layer_num, hidden_layer_size)
    assert new_state["cell"].shape == (B, layer_num, hidden_layer_size)
    assert jnp.allclose(logits, ref_logits, atol=5e-3, rtol=5e-3)
    assert jnp.allclose(new_state["hidden"], ref_state["hidden"], atol=5e-3, rtol=5e-3)
    assert jnp.allclose(new_state["cell"], ref_state["cell"], atol=5e-3, rtol=5e-3)

    # Second step feeding the recurrent state back (exercises the h0/c0 path).
    obs2 = jax.random.normal(jax.random.PRNGKey(1), (B, T) + state_shape, jnp.float32)
    logits2, st2 = recurrent_forward(prep, obs2, state_shape, state=new_state)
    jax.block_until_ready((logits2, st2))
    ref_logits2, ref_st2 = recurrent_reference(params, obs2, state_shape, state=ref_state)
    assert jnp.allclose(logits2, ref_logits2, atol=5e-3, rtol=5e-3)
    assert jnp.allclose(st2["hidden"], ref_st2["hidden"], atol=5e-3, rtol=5e-3)
    assert jnp.allclose(st2["cell"], ref_st2["cell"], atol=5e-3, rtol=5e-3)

    print("KERNEL_OK")
</pallas_src>

<mosaic_0001>
module attributes {stable_mosaic.version = 11 : i64} {
  func.func @_recurrent_kernel(%arg0: memref<16x16xf32, #tpu.memory_space<vmem>>, %arg1: memref<16x128xf32, #tpu.memory_space<vmem>>, %arg2: memref<1x128xf32, #tpu.memory_space<vmem>>, %arg3: memref<2x32x128xf32, #tpu.memory_space<vmem>>, %arg4: memref<2x1x128xf32, #tpu.memory_space<vmem>>, %arg5: memref<2x32x128xf32, #tpu.memory_space<vmem>>, %arg6: memref<32x4xf32, #tpu.memory_space<vmem>>, %arg7: memref<1x4xf32, #tpu.memory_space<vmem>>, %arg8: memref<2x2x32xf32, #tpu.memory_space<vmem>>, %arg9: memref<2x2x32xf32, #tpu.memory_space<vmem>>, %arg10: memref<2x4xf32, #tpu.memory_space<vmem>>, %arg11: memref<2x2x32xf32, #tpu.memory_space<vmem>>, %arg12: memref<2x2x32xf32, #tpu.memory_space<vmem>>) attributes {dimension_semantics = [], scalar_prefetch = 0 : i64, scratch_operands = 0 : i64, tpu.core_type = #tpu.core_type<tc>} {
    %c0 = arith.constant 0 : index
    %c0_0 = arith.constant 0 : index
    %0 = vector.load %arg0[%c0, %c0_0] : memref<16x16xf32, #tpu.memory_space<vmem>>, vector<16x16xf32>
    %c0_1 = arith.constant 0 : index
    %c0_2 = arith.constant 0 : index
    %1 = vector.load %arg1[%c0_1, %c0_2] : memref<16x128xf32, #tpu.memory_space<vmem>>, vector<16x128xf32>
    %cst = arith.constant dense<0.000000e+00> : vector<16x128xf32>
    %2 = tpu.matmul %0, %1, %cst {dimension_numbers = #tpu.dot_dimension_numbers<[1], [0], [0], [1], [0, 0, 1, 1], [], []>} : vector<16x16xf32>, vector<16x128xf32>, vector<16x128xf32> -> vector<16x128xf32>
    %c0_3 = arith.constant 0 : index
    %c0_4 = arith.constant 0 : index
    %3 = vector.load %arg2[%c0_3, %c0_4] : memref<1x128xf32, #tpu.memory_space<vmem>>, vector<1x128xf32>
    %4 = vector.broadcast %3 : vector<1x128xf32> to vector<16x128xf32>
    %5 = arith.addf %2, %4 : vector<16x128xf32>
    %6 = tpu.iota {dimensions = array<i32: 1>} : vector<2x128xi32>
    %c64_i32 = arith.constant 64 : i32
    %7 = vector.broadcast %c64_i32 : i32 to vector<2x128xi32>
    %8 = arith.cmpi sge, %6, %7 : vector<2x128xi32>
    %c96_i32 = arith.constant 96 : i32
    %9 = vector.broadcast %c96_i32 : i32 to vector<2x128xi32>
    %10 = arith.cmpi slt, %6, %9 : vector<2x128xi32>
    %11 = arith.andi %8, %10 : vector<2x128xi1>
    %c0_5 = arith.constant 0 : index
    %c0_6 = arith.constant 0 : index
    %c0_7 = arith.constant 0 : index
    %12 = vector.load %arg8[%c0_5, %c0_6, %c0_7] : memref<2x2x32xf32, #tpu.memory_space<vmem>>, vector<1x2x32xf32>
    %13 = vector.shape_cast %12 : vector<1x2x32xf32> to vector<2x32xf32>
    %c1 = arith.constant 1 : index
    %c0_8 = arith.constant 0 : index
    %c0_9 = arith.constant 0 : index
    %14 = vector.load %arg8[%c1, %c0_8, %c0_9] : memref<2x2x32xf32, #tpu.memory_space<vmem>>, vector<1x2x32xf32>
    %15 = vector.shape_cast %14 : vector<1x2x32xf32> to vector<2x32xf32>
    %c0_10 = arith.constant 0 : index
    %c0_11 = arith.constant 0 : index
    %c0_12 = arith.constant 0 : index
    %16 = vector.load %arg9[%c0_10, %c0_11, %c0_12] : memref<2x2x32xf32, #tpu.memory_space<vmem>>, vector<1x2x32xf32>
    %17 = vector.shape_cast %16 : vector<1x2x32xf32> to vector<2x32xf32>
    %c1_13 = arith.constant 1 : index
    %c0_14 = arith.constant 0 : index
    %c0_15 = arith.constant 0 : index
    %18 = vector.load %arg9[%c1_13, %c0_14, %c0_15] : memref<2x2x32xf32, #tpu.memory_space<vmem>>, vector<1x2x32xf32>
    %19 = vector.shape_cast %18 : vector<1x2x32xf32> to vector<2x32xf32>
    %20 = vector.extract_strided_slice %5 {offsets = [0, 0], sizes = [2, 128], strides = [1, 1]} : vector<16x128xf32> to vector<2x128xf32>
    %c0_16 = arith.constant 0 : index
    %c0_17 = arith.constant 0 : index
    %c0_18 = arith.constant 0 : index
    %21 = vector.load %arg5[%c0_16, %c0_17, %c0_18] : memref<2x32x128xf32, #tpu.memory_space<vmem>>, vector<1x32x128xf32>
    %22 = vector.shape_cast %21 : vector<1x32x128xf32> to vector<32x128xf32>
    %cst_19 = arith.constant dense<0.000000e+00> : vector<2x128xf32>
    %23 = tpu.matmul %13, %22, %cst_19 {dimension_numbers = #tpu.dot_dimension_numbers<[1], [0], [0], [1], [0, 0, 1, 1], [], []>} : vector<2x32xf32>, vector<32x128xf32>, vector<2x128xf32> -> vector<2x128xf32>
    %24 = arith.addf %20, %23 : vector<2x128xf32>
    %25 = arith.negf %24 : vector<2x128xf32>
    %26 = math.exp %25 : vector<2x128xf32>
    %cst_20 = arith.constant 1.000000e+00 : f32
    %27 = vector.broadcast %cst_20 : f32 to vector<2x128xf32>
    %28 = arith.addf %27, %26 : vector<2x128xf32>
    %29 = arith.divf %27, %28 : vector<2x128xf32>
    %30 = math.tanh %24 : vector<2x128xf32>
    %31 = arith.select %11, %30, %29 : vector<2x128xi1>, vector<2x128xf32>
    %32 = vector.extract_strided_slice %31 {offsets = [0, 0], sizes = [2, 32], strides = [1, 1]} : vector<2x128xf32> to vector<2x32xf32>
    %33 = vector.extract_strided_slice %31 {offsets = [0, 32], sizes = [2, 32], strides = [1, 1]} : vector<2x128xf32> to vector<2x32xf32>
    %34 = vector.extract_strided_slice %31 {offsets = [0, 64], sizes = [2, 32], strides = [1, 1]} : vector<2x128xf32> to vector<2x32xf32>
    %35 = vector.extract_strided_slice %31 {offsets = [0, 96], sizes = [2, 32], strides = [1, 1]} : vector<2x128xf32> to vector<2x32xf32>
    %36 = arith.mulf %33, %17 : vector<2x32xf32>
    %37 = arith.mulf %32, %34 : vector<2x32xf32>
    %38 = arith.addf %36, %37 : vector<2x32xf32>
    %39 = math.tanh %38 : vector<2x32xf32>
    %40 = arith.mulf %35, %39 : vector<2x32xf32>
    %c1_21 = arith.constant 1 : index
    %c0_22 = arith.constant 0 : index
    %c0_23 = arith.constant 0 : index
    %41 = vector.load %arg3[%c1_21, %c0_22, %c0_23] : memref<2x32x128xf32, #tpu.memory_space<vmem>>, vector<1x32x128xf32>
    %42 = vector.shape_cast %41 : vector<1x32x128xf32> to vector<32x128xf32>
    %cst_24 = arith.constant dense<0.000000e+00> : vector<2x128xf32>
    %43 = tpu.matmul %40, %42, %cst_24 {dimension_numbers = #tpu.dot_dimension_numbers<[1], [0], [0], [1], [0, 0, 1, 1], [], []>} : vector<2x32xf32>, vector<32x128xf32>, vector<2x128xf32> -> vector<2x128xf32>
    %c1_25 = arith.constant 1 : index
    %c0_26 = arith.constant 0 : index
    %c0_27 = arith.constant 0 : index
    %44 = vector.load %arg4[%c1_25, %c0_26, %c0_27] : memref<2x1x128xf32, #tpu.memory_space<vmem>>, vector<1x1x128xf32>
    %45 = vector.shape_cast %44 : vector<1x1x128xf32> to vector<1x128xf32>
    %46 = vector.broadcast %45 : vector<1x128xf32> to vector<2x128xf32>
    %47 = arith.addf %43, %46 : vector<2x128xf32>
    %c1_28 = arith.constant 1 : index
    %c0_29 = arith.constant 0 : index
    %c0_30 = arith.constant 0 : index
    %48 = vector.load %arg5[%c1_28, %c0_29, %c0_30] : memref<2x32x128xf32, #tpu.memory_space<vmem>>, vector<1x32x128xf32>
    %49 = vector.shape_cast %48 : vector<1x32x128xf32> to vector<32x128xf32>
    %cst_31 = arith.constant dense<0.000000e+00> : vector<2x128xf32>
    %50 = tpu.matmul %15, %49, %cst_31 {dimension_numbers = #tpu.dot_dimension_numbers<[1], [0], [0], [1], [0, 0, 1, 1], [], []>} : vector<2x32xf32>, vector<32x128xf32>, vector<2x128xf32> -> vector<2x128xf32>
    %51 = arith.addf %47, %50 : vector<2x128xf32>
    %52 = arith.negf %51 : vector<2x128xf32>
    %53 = math.exp %52 : vector<2x128xf32>
    %cst_32 = arith.constant 1.000000e+00 : f32
    %54 = vector.broadcast %cst_32 : f32 to vector<2x128xf32>
    %55 = arith.addf %54, %53 : vector<2x128xf32>
    %56 = arith.divf %54, %55 : vector<2x128xf32>
    %57 = math.tanh %51 : vector<2x128xf32>
    %58 = arith.select %11, %57, %56 : vector<2x128xi1>, vector<2x128xf32>
    %59 = vector.extract_strided_slice %58 {offsets = [0, 0], sizes = [2, 32], strides = [1, 1]} : vector<2x128xf32> to vector<2x32xf32>
    %60 = vector.extract_strided_slice %58 {offsets = [0, 32], sizes = [2, 32], strides = [1, 1]} : vector<2x128xf32> to vector<2x32xf32>
    %61 = vector.extract_strided_slice %58 {offsets = [0, 64], sizes = [2, 32], strides = [1, 1]} : vector<2x128xf32> to vector<2x32xf32>
    %62 = vector.extract_strided_slice %58 {offsets = [0, 96], sizes = [2, 32], strides = [1, 1]} : vector<2x128xf32> to vector<2x32xf32>
    %63 = arith.mulf %60, %19 : vector<2x32xf32>
    %64 = arith.mulf %59, %61 : vector<2x32xf32>
    %65 = arith.addf %63, %64 : vector<2x32xf32>
    %66 = math.tanh %65 : vector<2x32xf32>
    %67 = arith.mulf %62, %66 : vector<2x32xf32>
    %68 = vector.extract_strided_slice %5 {offsets = [2, 0], sizes = [2, 128], strides = [1, 1]} : vector<16x128xf32> to vector<2x128xf32>
    %c0_33 = arith.constant 0 : index
    %c0_34 = arith.constant 0 : index
    %c0_35 = arith.constant 0 : index
    %69 = vector.load %arg5[%c0_33, %c0_34, %c0_35] : memref<2x32x128xf32, #tpu.memory_space<vmem>>, vector<1x32x128xf32>
    %70 = vector.shape_cast %69 : vector<1x32x128xf32> to vector<32x128xf32>
    %cst_36 = arith.constant dense<0.000000e+00> : vector<2x128xf32>
    %71 = tpu.matmul %40, %70, %cst_36 {dimension_numbers = #tpu.dot_dimension_numbers<[1], [0], [0], [1], [0, 0, 1, 1], [], []>} : vector<2x32xf32>, vector<32x128xf32>, vector<2x128xf32> -> vector<2x128xf32>
    %72 = arith.addf %68, %71 : vector<2x128xf32>
    %73 = arith.negf %72 : vector<2x128xf32>
    %74 = math.exp %73 : vector<2x128xf32>
    %cst_37 = arith.constant 1.000000e+00 : f32
    %75 = vector.broadcast %cst_37 : f32 to vector<2x128xf32>
    %76 = arith.addf %75, %74 : vector<2x128xf32>
    %77 = arith.divf %75, %76 : vector<2x128xf32>
    %78 = math.tanh %72 : vector<2x128xf32>
    %79 = arith.select %11, %78, %77 : vector<2x128xi1>, vector<2x128xf32>
    %80 = vector.extract_strided_slice %79 {offsets = [0, 0], sizes = [2, 32], strides = [1, 1]} : vector<2x128xf32> to vector<2x32xf32>
    %81 = vector.extract_strided_slice %79 {offsets = [0, 32], sizes = [2, 32], strides = [1, 1]} : vector<2x128xf32> to vector<2x32xf32>
    %82 = vector.extract_strided_slice %79 {offsets = [0, 64], sizes = [2, 32], strides = [1, 1]} : vector<2x128xf32> to vector<2x32xf32>
    %83 = vector.extract_strided_slice %79 {offsets = [0, 96], sizes = [2, 32], strides = [1, 1]} : vector<2x128xf32> to vector<2x32xf32>
    %84 = arith.mulf %81, %38 : vector<2x32xf32>
    %85 = arith.mulf %80, %82 : vector<2x32xf32>
    %86 = arith.addf %84, %85 : vector<2x32xf32>
    %87 = math.tanh %86 : vector<2x32xf32>
    %88 = arith.mulf %83, %87 : vector<2x32xf32>
    %c1_38 = arith.constant 1 : index
    %c0_39 = arith.constant 0 : index
    %c0_40 = arith.constant 0 : index
    %89 = vector.load %arg3[%c1_38, %c0_39, %c0_40] : memref<2x32x128xf32, #tpu.memory_space<vmem>>, vector<1x32x128xf32>
    %90 = vector.shape_cast %89 : vector<1x32x128xf32> to vector<32x128xf32>
    %cst_41 = arith.constant dense<0.000000e+00> : vector<2x128xf32>
    %91 = tpu.matmul %88, %90, %cst_41 {dimension_numbers = #tpu.dot_dimension_numbers<[1], [0], [0], [1], [0, 0, 1, 1], [], []>} : vector<2x32xf32>, vector<32x128xf32>, vector<2x128xf32> -> vector<2x128xf32>
    %c1_42 = arith.constant 1 : index
    %c0_43 = arith.constant 0 : index
    %c0_44 = arith.constant 0 : index
    %92 = vector.load %arg4[%c1_42, %c0_43, %c0_44] : memref<2x1x128xf32, #tpu.memory_space<vmem>>, vector<1x1x128xf32>
    %93 = vector.shape_cast %92 : vector<1x1x128xf32> to vector<1x128xf32>
    %94 = vector.broadcast %93 : vector<1x128xf32> to vector<2x128xf32>
    %95 = arith.addf %91, %94 : vector<2x128xf32>
    %c1_45 = arith.constant 1 : index
    %c0_46 = arith.constant 0 : index
    %c0_47 = arith.constant 0 : index
    %96 = vector.load %arg5[%c1_45, %c0_46, %c0_47] : memref<2x32x128xf32, #tpu.memory_space<vmem>>, vector<1x32x128xf32>
    %97 = vector.shape_cast %96 : vector<1x32x128xf32> to vector<32x128xf32>
    %cst_48 = arith.constant dense<0.000000e+00> : vector<2x128xf32>
    %98 = tpu.matmul %67, %97, %cst_48 {dimension_numbers = #tpu.dot_dimension_numbers<[1], [0], [0], [1], [0, 0, 1, 1], [], []>} : vector<2x32xf32>, vector<32x128xf32>, vector<2x128xf32> -> vector<2x128xf32>
    %99 = arith.addf %95, %98 : vector<2x128xf32>
    %100 = arith.negf %99 : vector<2x128xf32>
    %101 = math.exp %100 : vector<2x128xf32>
    %cst_49 = arith.constant 1.000000e+00 : f32
    %102 = vector.broadcast %cst_49 : f32 to vector<2x128xf32>
    %103 = arith.addf %102, %101 : vector<2x128xf32>
    %104 = arith.divf %102, %103 : vector<2x128xf32>
    %105 = math.tanh %99 : vector<2x128xf32>
    %106 = arith.select %11, %105, %104 : vector<2x128xi1>, vector<2x128xf32>
    %107 = vector.extract_strided_slice %106 {offsets = [0, 0], sizes = [2, 32], strides = [1, 1]} : vector<2x128xf32> to vector<2x32xf32>
    %108 = vector.extract_strided_slice %106 {offsets = [0, 32], sizes = [2, 32], strides = [1, 1]} : vector<2x128xf32> to vector<2x32xf32>
    %109 = vector.extract_strided_slice %106 {offsets = [0, 64], sizes = [2, 32], strides = [1, 1]} : vector<2x128xf32> to vector<2x32xf32>
    %110 = vector.extract_strided_slice %106 {offsets = [0, 96], sizes = [2, 32], strides = [1, 1]} : vector<2x128xf32> to vector<2x32xf32>
    %111 = arith.mulf %108, %65 : vector<2x32xf32>
    %112 = arith.mulf %107, %109 : vector<2x32xf32>
    %113 = arith.addf %111, %112 : vector<2x32xf32>
    %114 = math.tanh %113 : vector<2x32xf32>
    %115 = arith.mulf %110, %114 : vector<2x32xf32>
    %116 = vector.extract_strided_slice %5 {offsets = [4, 0], sizes = [2, 128], strides = [1, 1]} : vector<16x128xf32> to vector<2x128xf32>
    %c0_50 = arith.constant 0 : index
    %c0_51 = arith.constant 0 : index
    %c0_52 = arith.constant 0 : index
    %117 = vector.load %arg5[%c0_50, %c0_51, %c0_52] : memref<2x32x128xf32, #tpu.memory_space<vmem>>, vector<1x32x128xf32>
    %118 = vector.shape_cast %117 : vector<1x32x128xf32> to vector<32x128xf32>
    %cst_53 = arith.constant dense<0.000000e+00> : vector<2x128xf32>
    %119 = tpu.matmul %88, %118, %cst_53 {dimension_numbers = #tpu.dot_dimension_numbers<[1], [0], [0], [1], [0, 0, 1, 1], [], []>} : vector<2x32xf32>, vector<32x128xf32>, vector<2x128xf32> -> vector<2x128xf32>
    %120 = arith.addf %116, %119 : vector<2x128xf32>
    %121 = arith.negf %120 : vector<2x128xf32>
    %122 = math.exp %121 : vector<2x128xf32>
    %cst_54 = arith.constant 1.000000e+00 : f32
    %123 = vector.broadcast %cst_54 : f32 to vector<2x128xf32>
    %124 = arith.addf %123, %122 : vector<2x128xf32>
    %125 = arith.divf %123, %124 : vector<2x128xf32>
    %126 = math.tanh %120 : vector<2x128xf32>
    %127 = arith.select %11, %126, %125 : vector<2x128xi1>, vector<2x128xf32>
    %128 = vector.extract_strided_slice %127 {offsets = [0, 0], sizes = [2, 32], strides = [1, 1]} : vector<2x128xf32> to vector<2x32xf32>
    %129 = vector.extract_strided_slice %127 {offsets = [0, 32], sizes = [2, 32], strides = [1, 1]} : vector<2x128xf32> to vector<2x32xf32>
    %130 = vector.extract_strided_slice %127 {offsets = [0, 64], sizes = [2, 32], strides = [1, 1]} : vector<2x128xf32> to vector<2x32xf32>
    %131 = vector.extract_strided_slice %127 {offsets = [0, 96], sizes = [2, 32], strides = [1, 1]} : vector<2x128xf32> to vector<2x32xf32>
    %132 = arith.mulf %129, %86 : vector<2x32xf32>
    %133 = arith.mulf %128, %130 : vector<2x32xf32>
    %134 = arith.addf %132, %133 : vector<2x32xf32>
    %135 = math.tanh %134 : vector<2x32xf32>
    %136 = arith.mulf %131, %135 : vector<2x32xf32>
    %c1_55 = arith.constant 1 : index
    %c0_56 = arith.constant 0 : index
    %c0_57 = arith.constant 0 : index
    %137 = vector.load %arg3[%c1_55, %c0_56, %c0_57] : memref<2x32x128xf32, #tpu.memory_space<vmem>>, vector<1x32x128xf32>
    %138 = vector.shape_cast %137 : vector<1x32x128xf32> to vector<32x128xf32>
    %cst_58 = arith.constant dense<0.000000e+00> : vector<2x128xf32>
    %139 = tpu.matmul %136, %138, %cst_58 {dimension_numbers = #tpu.dot_dimension_numbers<[1], [0], [0], [1], [0, 0, 1, 1], [], []>} : vector<2x32xf32>, vector<32x128xf32>, vector<2x128xf32> -> vector<2x128xf32>
    %c1_59 = arith.constant 1 : index
    %c0_60 = arith.constant 0 : index
    %c0_61 = arith.constant 0 : index
    %140 = vector.load %arg4[%c1_59, %c0_60, %c0_61] : memref<2x1x128xf32, #tpu.memory_space<vmem>>, vector<1x1x128xf32>
    %141 = vector.shape_cast %140 : vector<1x1x128xf32> to vector<1x128xf32>
    %142 = vector.broadcast %141 : vector<1x128xf32> to vector<2x128xf32>
    %143 = arith.addf %139, %142 : vector<2x128xf32>
    %c1_62 = arith.constant 1 : index
    %c0_63 = arith.constant 0 : index
    %c0_64 = arith.constant 0 : index
    %144 = vector.load %arg5[%c1_62, %c0_63, %c0_64] : memref<2x32x128xf32, #tpu.memory_space<vmem>>, vector<1x32x128xf32>
    %145 = vector.shape_cast %144 : vector<1x32x128xf32> to vector<32x128xf32>
    %cst_65 = arith.constant dense<0.000000e+00> : vector<2x128xf32>
    %146 = tpu.matmul %115, %145, %cst_65 {dimension_numbers = #tpu.dot_dimension_numbers<[1], [0], [0], [1], [0, 0, 1, 1], [], []>} : vector<2x32xf32>, vector<32x128xf32>, vector<2x128xf32> -> vector<2x128xf32>
    %147 = arith.addf %143, %146 : vector<2x128xf32>
    %148 = arith.negf %147 : vector<2x128xf32>
    %149 = math.exp %148 : vector<2x128xf32>
    %cst_66 = arith.constant 1.000000e+00 : f32
    %150 = vector.broadcast %cst_66 : f32 to vector<2x128xf32>
    %151 = arith.addf %150, %149 : vector<2x128xf32>
    %152 = arith.divf %150, %151 : vector<2x128xf32>
    %153 = math.tanh %147 : vector<2x128xf32>
    %154 = arith.select %11, %153, %152 : vector<2x128xi1>, vector<2x128xf32>
    %155 = vector.extract_strided_slice %154 {offsets = [0, 0], sizes = [2, 32], strides = [1, 1]} : vector<2x128xf32> to vector<2x32xf32>
    %156 = vector.extract_strided_slice %154 {offsets = [0, 32], sizes = [2, 32], strides = [1, 1]} : vector<2x128xf32> to vector<2x32xf32>
    %157 = vector.extract_strided_slice %154 {offsets = [0, 64], sizes = [2, 32], strides = [1, 1]} : vector<2x128xf32> to vector<2x32xf32>
    %158 = vector.extract_strided_slice %154 {offsets = [0, 96], sizes = [2, 32], strides = [1, 1]} : vector<2x128xf32> to vector<2x32xf32>
    %159 = arith.mulf %156, %113 : vector<2x32xf32>
    %160 = arith.mulf %155, %157 : vector<2x32xf32>
    %161 = arith.addf %159, %160 : vector<2x32xf32>
    %162 = math.tanh %161 : vector<2x32xf32>
    %163 = arith.mulf %158, %162 : vector<2x32xf32>
    %164 = vector.extract_strided_slice %5 {offsets = [6, 0], sizes = [2, 128], strides = [1, 1]} : vector<16x128xf32> to vector<2x128xf32>
    %c0_67 = arith.constant 0 : index
    %c0_68 = arith.constant 0 : index
    %c0_69 = arith.constant 0 : index
    %165 = vector.load %arg5[%c0_67, %c0_68, %c0_69] : memref<2x32x128xf32, #tpu.memory_space<vmem>>, vector<1x32x128xf32>
    %166 = vector.shape_cast %165 : vector<1x32x128xf32> to vector<32x128xf32>
    %cst_70 = arith.constant dense<0.000000e+00> : vector<2x128xf32>
    %167 = tpu.matmul %136, %166, %cst_70 {dimension_numbers = #tpu.dot_dimension_numbers<[1], [0], [0], [1], [0, 0, 1, 1], [], []>} : vector<2x32xf32>, vector<32x128xf32>, vector<2x128xf32> -> vector<2x128xf32>
    %168 = arith.addf %164, %167 : vector<2x128xf32>
    %169 = arith.negf %168 : vector<2x128xf32>
    %170 = math.exp %169 : vector<2x128xf32>
    %cst_71 = arith.constant 1.000000e+00 : f32
    %171 = vector.broadcast %cst_71 : f32 to vector<2x128xf32>
    %172 = arith.addf %171, %170 : vector<2x128xf32>
    %173 = arith.divf %171, %172 : vector<2x128xf32>
    %174 = math.tanh %168 : vector<2x128xf32>
    %175 = arith.select %11, %174, %173 : vector<2x128xi1>, vector<2x128xf32>
    %176 = vector.extract_strided_slice %175 {offsets = [0, 0], sizes = [2, 32], strides = [1, 1]} : vector<2x128xf32> to vector<2x32xf32>
    %177 = vector.extract_strided_slice %175 {offsets = [0, 32], sizes = [2, 32], strides = [1, 1]} : vector<2x128xf32> to vector<2x32xf32>
    %178 = vector.extract_strided_slice %175 {offsets = [0, 64], sizes = [2, 32], strides = [1, 1]} : vector<2x128xf32> to vector<2x32xf32>
    %179 = vector.extract_strided_slice %175 {offsets = [0, 96], sizes = [2, 32], strides = [1, 1]} : vector<2x128xf32> to vector<2x32xf32>
    %180 = arith.mulf %177, %134 : vector<2x32xf32>
    %181 = arith.mulf %176, %178 : vector<2x32xf32>
    %182 = arith.addf %180, %181 : vector<2x32xf32>
    %183 = math.tanh %182 : vector<2x32xf32>
    %184 = arith.mulf %179, %183 : vector<2x32xf32>
    %c1_72 = arith.constant 1 : index
    %c0_73 = arith.constant 0 : index
    %c0_74 = arith.constant 0 : index
    %185 = vector.load %arg3[%c1_72, %c0_73, %c0_74] : memref<2x32x128xf32, #tpu.memory_space<vmem>>, vector<1x32x128xf32>
    %186 = vector.shape_cast %185 : vector<1x32x128xf32> to vector<32x128xf32>
    %cst_75 = arith.constant dense<0.000000e+00> : vector<2x128xf32>
    %187 = tpu.matmul %184, %186, %cst_75 {dimension_numbers = #tpu.dot_dimension_numbers<[1], [0], [0], [1], [0, 0, 1, 1], [], []>} : vector<2x32xf32>, vector<32x128xf32>, vector<2x128xf32> -> vector<2x128xf32>
    %c1_76 = arith.constant 1 : index
    %c0_77 = arith.constant 0 : index
    %c0_78 = arith.constant 0 : index
    %188 = vector.load %arg4[%c1_76, %c0_77, %c0_78] : memref<2x1x128xf32, #tpu.memory_space<vmem>>, vector<1x1x128xf32>
    %189 = vector.shape_cast %188 : vector<1x1x128xf32> to vector<1x128xf32>
    %190 = vector.broadcast %189 : vector<1x128xf32> to vector<2x128xf32>
    %191 = arith.addf %187, %190 : vector<2x128xf32>
    %c1_79 = arith.constant 1 : index
    %c0_80 = arith.constant 0 : index
    %c0_81 = arith.constant 0 : index
    %192 = vector.load %arg5[%c1_79, %c0_80, %c0_81] : memref<2x32x128xf32, #tpu.memory_space<vmem>>, vector<1x32x128xf32>
    %193 = vector.shape_cast %192 : vector<1x32x128xf32> to vector<32x128xf32>
    %cst_82 = arith.constant dense<0.000000e+00> : vector<2x128xf32>
    %194 = tpu.matmul %163, %193, %cst_82 {dimension_numbers = #tpu.dot_dimension_numbers<[1], [0], [0], [1], [0, 0, 1, 1], [], []>} : vector<2x32xf32>, vector<32x128xf32>, vector<2x128xf32> -> vector<2x128xf32>
    %195 = arith.addf %191, %194 : vector<2x128xf32>
    %196 = arith.negf %195 : vector<2x128xf32>
    %197 = math.exp %196 : vector<2x128xf32>
    %cst_83 = arith.constant 1.000000e+00 : f32
    %198 = vector.broadcast %cst_83 : f32 to vector<2x128xf32>
    %199 = arith.addf %198, %197 : vector<2x128xf32>
    %200 = arith.divf %198, %199 : vector<2x128xf32>
    %201 = math.tanh %195 : vector<2x128xf32>
    %202 = arith.select %11, %201, %200 : vector<2x128xi1>, vector<2x128xf32>
    %203 = vector.extract_strided_slice %202 {offsets = [0, 0], sizes = [2, 32], strides = [1, 1]} : vector<2x128xf32> to vector<2x32xf32>
    %204 = vector.extract_strided_slice %202 {offsets = [0, 32], sizes = [2, 32], strides = [1, 1]} : vector<2x128xf32> to vector<2x32xf32>
    %205 = vector.extract_strided_slice %202 {offsets = [0, 64], sizes = [2, 32], strides = [1, 1]} : vector<2x128xf32> to vector<2x32xf32>
    %206 = vector.extract_strided_slice %202 {offsets = [0, 96], sizes = [2, 32], strides = [1, 1]} : vector<2x128xf32> to vector<2x32xf32>
    %207 = arith.mulf %204, %161 : vector<2x32xf32>
    %208 = arith.mulf %203, %205 : vector<2x32xf32>
    %209 = arith.addf %207, %208 : vector<2x32xf32>
    %210 = math.tanh %209 : vector<2x32xf32>
    %211 = arith.mulf %206, %210 : vector<2x32xf32>
    %212 = vector.extract_strided_slice %5 {offsets = [8, 0], sizes = [2, 128], strides = [1, 1]} : vector<16x128xf32> to vector<2x128xf32>
    %c0_84 = arith.constant 0 : index
    %c0_85 = arith.constant 0 : index
    %c0_86 = arith.constant 0 : index
    %213 = vector.load %arg5[%c0_84, %c0_85, %c0_86] : memref<2x32x128xf32, #tpu.memory_space<vmem>>, vector<1x32x128xf32>
    %214 = vector.shape_cast %213 : vector<1x32x128xf32> to vector<32x128xf32>
    %cst_87 = arith.constant dense<0.000000e+00> : vector<2x128xf32>
    %215 = tpu.matmul %184, %214, %cst_87 {dimension_numbers = #tpu.dot_dimension_numbers<[1], [0], [0], [1], [0, 0, 1, 1], [], []>} : vector<2x32xf32>, vector<32x128xf32>, vector<2x128xf32> -> vector<2x128xf32>
    %216 = arith.addf %212, %215 : vector<2x128xf32>
    %217 = arith.negf %216 : vector<2x128xf32>
    %218 = math.exp %217 : vector<2x128xf32>
    %cst_88 = arith.constant 1.000000e+00 : f32
    %219 = vector.broadcast %cst_88 : f32 to vector<2x128xf32>
    %220 = arith.addf %219, %218 : vector<2x128xf32>
    %221 = arith.divf %219, %220 : vector<2x128xf32>
    %222 = math.tanh %216 : vector<2x128xf32>
    %223 = arith.select %11, %222, %221 : vector<2x128xi1>, vector<2x128xf32>
    %224 = vector.extract_strided_slice %223 {offsets = [0, 0], sizes = [2, 32], strides = [1, 1]} : vector<2x128xf32> to vector<2x32xf32>
    %225 = vector.extract_strided_slice %223 {offsets = [0, 32], sizes = [2, 32], strides = [1, 1]} : vector<2x128xf32> to vector<2x32xf32>
    %226 = vector.extract_strided_slice %223 {offsets = [0, 64], sizes = [2, 32], strides = [1, 1]} : vector<2x128xf32> to vector<2x32xf32>
    %227 = vector.extract_strided_slice %223 {offsets = [0, 96], sizes = [2, 32], strides = [1, 1]} : vector<2x128xf32> to vector<2x32xf32>
    %228 = arith.mulf %225, %182 : vector<2x32xf32>
    %229 = arith.mulf %224, %226 : vector<2x32xf32>
    %230 = arith.addf %228, %229 : vector<2x32xf32>
    %231 = math.tanh %230 : vector<2x32xf32>
    %232 = arith.mulf %227, %231 : vector<2x32xf32>
    %c1_89 = arith.constant 1 : index
    %c0_90 = arith.constant 0 : index
    %c0_91 = arith.constant 0 : index
    %233 = vector.load %arg3[%c1_89, %c0_90, %c0_91] : memref<2x32x128xf32, #tpu.memory_space<vmem>>, vector<1x32x128xf32>
    %234 = vector.shape_cast %233 : vector<1x32x128xf32> to vector<32x128xf32>
    %cst_92 = arith.constant dense<0.000000e+00> : vector<2x128xf32>
    %235 = tpu.matmul %232, %234, %cst_92 {dimension_numbers = #tpu.dot_dimension_numbers<[1], [0], [0], [1], [0, 0, 1, 1], [], []>} : vector<2x32xf32>, vector<32x128xf32>, vector<2x128xf32> -> vector<2x128xf32>
    %c1_93 = arith.constant 1 : index
    %c0_94 = arith.constant 0 : index
    %c0_95 = arith.constant 0 : index
    %236 = vector.load %arg4[%c1_93, %c0_94, %c0_95] : memref<2x1x128xf32, #tpu.memory_space<vmem>>, vector<1x1x128xf32>
    %237 = vector.shape_cast %236 : vector<1x1x128xf32> to vector<1x128xf32>
    %238 = vector.broadcast %237 : vector<1x128xf32> to vector<2x128xf32>
    %239 = arith.addf %235, %238 : vector<2x128xf32>
    %c1_96 = arith.constant 1 : index
    %c0_97 = arith.constant 0 : index
    %c0_98 = arith.constant 0 : index
    %240 = vector.load %arg5[%c1_96, %c0_97, %c0_98] : memref<2x32x128xf32, #tpu.memory_space<vmem>>, vector<1x32x128xf32>
    %241 = vector.shape_cast %240 : vector<1x32x128xf32> to vector<32x128xf32>
    %cst_99 = arith.constant dense<0.000000e+00> : vector<2x128xf32>
    %242 = tpu.matmul %211, %241, %cst_99 {dimension_numbers = #tpu.dot_dimension_numbers<[1], [0], [0], [1], [0, 0, 1, 1], [], []>} : vector<2x32xf32>, vector<32x128xf32>, vector<2x128xf32> -> vector<2x128xf32>
    %243 = arith.addf %239, %242 : vector<2x128xf32>
    %244 = arith.negf %243 : vector<2x128xf32>
    %245 = math.exp %244 : vector<2x128xf32>
    %cst_100 = arith.constant 1.000000e+00 : f32
    %246 = vector.broadcast %cst_100 : f32 to vector<2x128xf32>
    %247 = arith.addf %246, %245 : vector<2x128xf32>
    %248 = arith.divf %246, %247 : vector<2x128xf32>
    %249 = math.tanh %243 : vector<2x128xf32>
    %250 = arith.select %11, %249, %248 : vector<2x128xi1>, vector<2x128xf32>
    %251 = vector.extract_strided_slice %250 {offsets = [0, 0], sizes = [2, 32], strides = [1, 1]} : vector<2x128xf32> to vector<2x32xf32>
    %252 = vector.extract_strided_slice %250 {offsets = [0, 32], sizes = [2, 32], strides = [1, 1]} : vector<2x128xf32> to vector<2x32xf32>
    %253 = vector.extract_strided_slice %250 {offsets = [0, 64], sizes = [2, 32], strides = [1, 1]} : vector<2x128xf32> to vector<2x32xf32>
    %254 = vector.extract_strided_slice %250 {offsets = [0, 96], sizes = [2, 32], strides = [1, 1]} : vector<2x128xf32> to vector<2x32xf32>
    %255 = arith.mulf %252, %209 : vector<2x32xf32>
    %256 = arith.mulf %251, %253 : vector<2x32xf32>
    %257 = arith.addf %255, %256 : vector<2x32xf32>
    %258 = math.tanh %257 : vector<2x32xf32>
    %259 = arith.mulf %254, %258 : vector<2x32xf32>
    %260 = vector.extract_strided_slice %5 {offsets = [10, 0], sizes = [2, 128], strides = [1, 1]} : vector<16x128xf32> to vector<2x128xf32>
    %c0_101 = arith.constant 0 : index
    %c0_102 = arith.constant 0 : index
    %c0_103 = arith.constant 0 : index
    %261 = vector.load %arg5[%c0_101, %c0_102, %c0_103] : memref<2x32x128xf32, #tpu.memory_space<vmem>>, vector<1x32x128xf32>
    %262 = vector.shape_cast %261 : vector<1x32x128xf32> to vector<32x128xf32>
    %cst_104 = arith.constant dense<0.000000e+00> : vector<2x128xf32>
    %263 = tpu.matmul %232, %262, %cst_104 {dimension_numbers = #tpu.dot_dimension_numbers<[1], [0], [0], [1], [0, 0, 1, 1], [], []>} : vector<2x32xf32>, vector<32x128xf32>, vector<2x128xf32> -> vector<2x128xf32>
    %264 = arith.addf %260, %263 : vector<2x128xf32>
    %265 = arith.negf %264 : vector<2x128xf32>
    %266 = math.exp %265 : vector<2x128xf32>
    %cst_105 = arith.constant 1.000000e+00 : f32
    %267 = vector.broadcast %cst_105 : f32 to vector<2x128xf32>
    %268 = arith.addf %267, %266 : vector<2x128xf32>
    %269 = arith.divf %267, %268 : vector<2x128xf32>
    %270 = math.tanh %264 : vector<2x128xf32>
    %271 = arith.select %11, %270, %269 : vector<2x128xi1>, vector<2x128xf32>
    %272 = vector.extract_strided_slice %271 {offsets = [0, 0], sizes = [2, 32], strides = [1, 1]} : vector<2x128xf32> to vector<2x32xf32>
    %273 = vector.extract_strided_slice %271 {offsets = [0, 32], sizes = [2, 32], strides = [1, 1]} : vector<2x128xf32> to vector<2x32xf32>
    %274 = vector.extract_strided_slice %271 {offsets = [0, 64], sizes = [2, 32], strides = [1, 1]} : vector<2x128xf32> to vector<2x32xf32>
    %275 = vector.extract_strided_slice %271 {offsets = [0, 96], sizes = [2, 32], strides = [1, 1]} : vector<2x128xf32> to vector<2x32xf32>
    %276 = arith.mulf %273, %230 : vector<2x32xf32>
    %277 = arith.mulf %272, %274 : vector<2x32xf32>
    %278 = arith.addf %276, %277 : vector<2x32xf32>
    %279 = math.tanh %278 : vector<2x32xf32>
    %280 = arith.mulf %275, %279 : vector<2x32xf32>
    %c1_106 = arith.constant 1 : index
    %c0_107 = arith.constant 0 : index
    %c0_108 = arith.constant 0 : index
    %281 = vector.load %arg3[%c1_106, %c0_107, %c0_108] : memref<2x32x128xf32, #tpu.memory_space<vmem>>, vector<1x32x128xf32>
    %282 = vector.shape_cast %281 : vector<1x32x128xf32> to vector<32x128xf32>
    %cst_109 = arith.constant dense<0.000000e+00> : vector<2x128xf32>
    %283 = tpu.matmul %280, %282, %cst_109 {dimension_numbers = #tpu.dot_dimension_numbers<[1], [0], [0], [1], [0, 0, 1, 1], [], []>} : vector<2x32xf32>, vector<32x128xf32>, vector<2x128xf32> -> vector<2x128xf32>
    %c1_110 = arith.constant 1 : index
    %c0_111 = arith.constant 0 : index
    %c0_112 = arith.constant 0 : index
    %284 = vector.load %arg4[%c1_110, %c0_111, %c0_112] : memref<2x1x128xf32, #tpu.memory_space<vmem>>, vector<1x1x128xf32>
    %285 = vector.shape_cast %284 : vector<1x1x128xf32> to vector<1x128xf32>
    %286 = vector.broadcast %285 : vector<1x128xf32> to vector<2x128xf32>
    %287 = arith.addf %283, %286 : vector<2x128xf32>
    %c1_113 = arith.constant 1 : index
    %c0_114 = arith.constant 0 : index
    %c0_115 = arith.constant 0 : index
    %288 = vector.load %arg5[%c1_113, %c0_114, %c0_115] : memref<2x32x128xf32, #tpu.memory_space<vmem>>, vector<1x32x128xf32>
    %289 = vector.shape_cast %288 : vector<1x32x128xf32> to vector<32x128xf32>
    %cst_116 = arith.constant dense<0.000000e+00> : vector<2x128xf32>
    %290 = tpu.matmul %259, %289, %cst_116 {dimension_numbers = #tpu.dot_dimension_numbers<[1], [0], [0], [1], [0, 0, 1, 1], [], []>} : vector<2x32xf32>, vector<32x128xf32>, vector<2x128xf32> -> vector<2x128xf32>
    %291 = arith.addf %287, %290 : vector<2x128xf32>
    %292 = arith.negf %291 : vector<2x128xf32>
    %293 = math.exp %292 : vector<2x128xf32>
    %cst_117 = arith.constant 1.000000e+00 : f32
    %294 = vector.broadcast %cst_117 : f32 to vector<2x128xf32>
    %295 = arith.addf %294, %293 : vector<2x128xf32>
    %296 = arith.divf %294, %295 : vector<2x128xf32>
    %297 = math.tanh %291 : vector<2x128xf32>
    %298 = arith.select %11, %297, %296 : vector<2x128xi1>, vector<2x128xf32>
    %299 = vector.extract_strided_slice %298 {offsets = [0, 0], sizes = [2, 32], strides = [1, 1]} : vector<2x128xf32> to vector<2x32xf32>
    %300 = vector.extract_strided_slice %298 {offsets = [0, 32], sizes = [2, 32], strides = [1, 1]} : vector<2x128xf32> to vector<2x32xf32>
    %301 = vector.extract_strided_slice %298 {offsets = [0, 64], sizes = [2, 32], strides = [1, 1]} : vector<2x128xf32> to vector<2x32xf32>
    %302 = vector.extract_strided_slice %298 {offsets = [0, 96], sizes = [2, 32], strides = [1, 1]} : vector<2x128xf32> to vector<2x32xf32>
    %303 = arith.mulf %300, %257 : vector<2x32xf32>
    %304 = arith.mulf %299, %301 : vector<2x32xf32>
    %305 = arith.addf %303, %304 : vector<2x32xf32>
    %306 = math.tanh %305 : vector<2x32xf32>
    %307 = arith.mulf %302, %306 : vector<2x32xf32>
    %308 = vector.extract_strided_slice %5 {offsets = [12, 0], sizes = [2, 128], strides = [1, 1]} : vector<16x128xf32> to vector<2x128xf32>
    %c0_118 = arith.constant 0 : index
    %c0_119 = arith.constant 0 : index
    %c0_120 = arith.constant 0 : index
    %309 = vector.load %arg5[%c0_118, %c0_119, %c0_120] : memref<2x32x128xf32, #tpu.memory_space<vmem>>, vector<1x32x128xf32>
    %310 = vector.shape_cast %309 : vector<1x32x128xf32> to vector<32x128xf32>
    %cst_121 = arith.constant dense<0.000000e+00> : vector<2x128xf32>
    %311 = tpu.matmul %280, %310, %cst_121 {dimension_numbers = #tpu.dot_dimension_numbers<[1], [0], [0], [1], [0, 0, 1, 1], [], []>} : vector<2x32xf32>, vector<32x128xf32>, vector<2x128xf32> -> vector<2x128xf32>
    %312 = arith.addf %308, %311 : vector<2x128xf32>
    %313 = arith.negf %312 : vector<2x128xf32>
    %314 = math.exp %313 : vector<2x128xf32>
    %cst_122 = arith.constant 1.000000e+00 : f32
    %315 = vector.broadcast %cst_122 : f32 to vector<2x128xf32>
    %316 = arith.addf %315, %314 : vector<2x128xf32>
    %317 = arith.divf %315, %316 : vector<2x128xf32>
    %318 = math.tanh %312 : vector<2x128xf32>
    %319 = arith.select %11, %318, %317 : vector<2x128xi1>, vector<2x128xf32>
    %320 = vector.extract_strided_slice %319 {offsets = [0, 0], sizes = [2, 32], strides = [1, 1]} : vector<2x128xf32> to vector<2x32xf32>
    %321 = vector.extract_strided_slice %319 {offsets = [0, 32], sizes = [2, 32], strides = [1, 1]} : vector<2x128xf32> to vector<2x32xf32>
    %322 = vector.extract_strided_slice %319 {offsets = [0, 64], sizes = [2, 32], strides = [1, 1]} : vector<2x128xf32> to vector<2x32xf32>
    %323 = vector.extract_strided_slice %319 {offsets = [0, 96], sizes = [2, 32], strides = [1, 1]} : vector<2x128xf32> to vector<2x32xf32>
    %324 = arith.mulf %321, %278 : vector<2x32xf32>
    %325 = arith.mulf %320, %322 : vector<2x32xf32>
    %326 = arith.addf %324, %325 : vector<2x32xf32>
    %327 = math.tanh %326 : vector<2x32xf32>
    %328 = arith.mulf %323, %327 : vector<2x32xf32>
    %c1_123 = arith.constant 1 : index
    %c0_124 = arith.constant 0 : index
    %c0_125 = arith.constant 0 : index
    %329 = vector.load %arg3[%c1_123, %c0_124, %c0_125] : memref<2x32x128xf32, #tpu.memory_space<vmem>>, vector<1x32x128xf32>
    %330 = vector.shape_cast %329 : vector<1x32x128xf32> to vector<32x128xf32>
    %cst_126 = arith.constant dense<0.000000e+00> : vector<2x128xf32>
    %331 = tpu.matmul %328, %330, %cst_126 {dimension_numbers = #tpu.dot_dimension_numbers<[1], [0], [0], [1], [0, 0, 1, 1], [], []>} : vector<2x32xf32>, vector<32x128xf32>, vector<2x128xf32> -> vector<2x128xf32>
    %c1_127 = arith.constant 1 : index
    %c0_128 = arith.constant 0 : index
    %c0_129 = arith.constant 0 : index
    %332 = vector.load %arg4[%c1_127, %c0_128, %c0_129] : memref<2x1x128xf32, #tpu.memory_space<vmem>>, vector<1x1x128xf32>
    %333 = vector.shape_cast %332 : vector<1x1x128xf32> to vector<1x128xf32>
    %334 = vector.broadcast %333 : vector<1x128xf32> to vector<2x128xf32>
    %335 = arith.addf %331, %334 : vector<2x128xf32>
    %c1_130 = arith.constant 1 : index
    %c0_131 = arith.constant 0 : index
    %c0_132 = arith.constant 0 : index
    %336 = vector.load %arg5[%c1_130, %c0_131, %c0_132] : memref<2x32x128xf32, #tpu.memory_space<vmem>>, vector<1x32x128xf32>
    %337 = vector.shape_cast %336 : vector<1x32x128xf32> to vector<32x128xf32>
    %cst_133 = arith.constant dense<0.000000e+00> : vector<2x128xf32>
    %338 = tpu.matmul %307, %337, %cst_133 {dimension_numbers = #tpu.dot_dimension_numbers<[1], [0], [0], [1], [0, 0, 1, 1], [], []>} : vector<2x32xf32>, vector<32x128xf32>, vector<2x128xf32> -> vector<2x128xf32>
    %339 = arith.addf %335, %338 : vector<2x128xf32>
    %340 = arith.negf %339 : vector<2x128xf32>
    %341 = math.exp %340 : vector<2x128xf32>
    %cst_134 = arith.constant 1.000000e+00 : f32
    %342 = vector.broadcast %cst_134 : f32 to vector<2x128xf32>
    %343 = arith.addf %342, %341 : vector<2x128xf32>
    %344 = arith.divf %342, %343 : vector<2x128xf32>
    %345 = math.tanh %339 : vector<2x128xf32>
    %346 = arith.select %11, %345, %344 : vector<2x128xi1>, vector<2x128xf32>
    %347 = vector.extract_strided_slice %346 {offsets = [0, 0], sizes = [2, 32], strides = [1, 1]} : vector<2x128xf32> to vector<2x32xf32>
    %348 = vector.extract_strided_slice %346 {offsets = [0, 32], sizes = [2, 32], strides = [1, 1]} : vector<2x128xf32> to vector<2x32xf32>
    %349 = vector.extract_strided_slice %346 {offsets = [0, 64], sizes = [2, 32], strides = [1, 1]} : vector<2x128xf32> to vector<2x32xf32>
    %350 = vector.extract_strided_slice %346 {offsets = [0, 96], sizes = [2, 32], strides = [1, 1]} : vector<2x128xf32> to vector<2x32xf32>
    %351 = arith.mulf %348, %305 : vector<2x32xf32>
    %352 = arith.mulf %347, %349 : vector<2x32xf32>
    %353 = arith.addf %351, %352 : vector<2x32xf32>
    %354 = math.tanh %353 : vector<2x32xf32>
    %355 = arith.mulf %350, %354 : vector<2x32xf32>
    %356 = vector.extract_strided_slice %5 {offsets = [14, 0], sizes = [2, 128], strides = [1, 1]} : vector<16x128xf32> to vector<2x128xf32>
    %c0_135 = arith.constant 0 : index
    %c0_136 = arith.constant 0 : index
    %c0_137 = arith.constant 0 : index
    %357 = vector.load %arg5[%c0_135, %c0_136, %c0_137] : memref<2x32x128xf32, #tpu.memory_space<vmem>>, vector<1x32x128xf32>
    %358 = vector.shape_cast %357 : vector<1x32x128xf32> to vector<32x128xf32>
    %cst_138 = arith.constant dense<0.000000e+00> : vector<2x128xf32>
    %359 = tpu.matmul %328, %358, %cst_138 {dimension_numbers = #tpu.dot_dimension_numbers<[1], [0], [0], [1], [0, 0, 1, 1], [], []>} : vector<2x32xf32>, vector<32x128xf32>, vector<2x128xf32> -> vector<2x128xf32>
    %360 = arith.addf %356, %359 : vector<2x128xf32>
    %361 = arith.negf %360 : vector<2x128xf32>
    %362 = math.exp %361 : vector<2x128xf32>
    %cst_139 = arith.constant 1.000000e+00 : f32
    %363 = vector.broadcast %cst_139 : f32 to vector<2x128xf32>
    %364 = arith.addf %363, %362 : vector<2x128xf32>
    %365 = arith.divf %363, %364 : vector<2x128xf32>
    %366 = math.tanh %360 : vector<2x128xf32>
    %367 = arith.select %11, %366, %365 : vector<2x128xi1>, vector<2x128xf32>
    %368 = vector.extract_strided_slice %367 {offsets = [0, 0], sizes = [2, 32], strides = [1, 1]} : vector<2x128xf32> to vector<2x32xf32>
    %369 = vector.extract_strided_slice %367 {offsets = [0, 32], sizes = [2, 32], strides = [1, 1]} : vector<2x128xf32> to vector<2x32xf32>
    %370 = vector.extract_strided_slice %367 {offsets = [0, 64], sizes = [2, 32], strides = [1, 1]} : vector<2x128xf32> to vector<2x32xf32>
    %371 = vector.extract_strided_slice %367 {offsets = [0, 96], sizes = [2, 32], strides = [1, 1]} : vector<2x128xf32> to vector<2x32xf32>
    %372 = arith.mulf %369, %326 : vector<2x32xf32>
    %373 = arith.mulf %368, %370 : vector<2x32xf32>
    %374 = arith.addf %372, %373 : vector<2x32xf32>
    %375 = math.tanh %374 : vector<2x32xf32>
    %376 = arith.mulf %371, %375 : vector<2x32xf32>
    %c1_140 = arith.constant 1 : index
    %c0_141 = arith.constant 0 : index
    %c0_142 = arith.constant 0 : index
    %377 = vector.load %arg3[%c1_140, %c0_141, %c0_142] : memref<2x32x128xf32, #tpu.memory_space<vmem>>, vector<1x32x128xf32>
    %378 = vector.shape_cast %377 : vector<1x32x128xf32> to vector<32x128xf32>
    %cst_143 = arith.constant dense<0.000000e+00> : vector<2x128xf32>
    %379 = tpu.matmul %376, %378, %cst_143 {dimension_numbers = #tpu.dot_dimension_numbers<[1], [0], [0], [1], [0, 0, 1, 1], [], []>} : vector<2x32xf32>, vector<32x128xf32>, vector<2x128xf32> -> vector<2x128xf32>
    %c1_144 = arith.constant 1 : index
    %c0_145 = arith.constant 0 : index
    %c0_146 = arith.constant 0 : index
    %380 = vector.load %arg4[%c1_144, %c0_145, %c0_146] : memref<2x1x128xf32, #tpu.memory_space<vmem>>, vector<1x1x128xf32>
    %381 = vector.shape_cast %380 : vector<1x1x128xf32> to vector<1x128xf32>
    %382 = vector.broadcast %381 : vector<1x128xf32> to vector<2x128xf32>
    %383 = arith.addf %379, %382 : vector<2x128xf32>
    %c1_147 = arith.constant 1 : index
    %c0_148 = arith.constant 0 : index
    %c0_149 = arith.constant 0 : index
    %384 = vector.load %arg5[%c1_147, %c0_148, %c0_149] : memref<2x32x128xf32, #tpu.memory_space<vmem>>, vector<1x32x128xf32>
    %385 = vector.shape_cast %384 : vector<1x32x128xf32> to vector<32x128xf32>
    %cst_150 = arith.constant dense<0.000000e+00> : vector<2x128xf32>
    %386 = tpu.matmul %355, %385, %cst_150 {dimension_numbers = #tpu.dot_dimension_numbers<[1], [0], [0], [1], [0, 0, 1, 1], [], []>} : vector<2x32xf32>, vector<32x128xf32>, vector<2x128xf32> -> vector<2x128xf32>
    %387 = arith.addf %383, %386 : vector<2x128xf32>
    %388 = arith.negf %387 : vector<2x128xf32>
    %389 = math.exp %388 : vector<2x128xf32>
    %cst_151 = arith.constant 1.000000e+00 : f32
    %390 = vector.broadcast %cst_151 : f32 to vector<2x128xf32>
    %391 = arith.addf %390, %389 : vector<2x128xf32>
    %392 = arith.divf %390, %391 : vector<2x128xf32>
    %393 = math.tanh %387 : vector<2x128xf32>
    %394 = arith.select %11, %393, %392 : vector<2x128xi1>, vector<2x128xf32>
    %395 = vector.extract_strided_slice %394 {offsets = [0, 0], sizes = [2, 32], strides = [1, 1]} : vector<2x128xf32> to vector<2x32xf32>
    %396 = vector.extract_strided_slice %394 {offsets = [0, 32], sizes = [2, 32], strides = [1, 1]} : vector<2x128xf32> to vector<2x32xf32>
    %397 = vector.extract_strided_slice %394 {offsets = [0, 64], sizes = [2, 32], strides = [1, 1]} : vector<2x128xf32> to vector<2x32xf32>
    %398 = vector.extract_strided_slice %394 {offsets = [0, 96], sizes = [2, 32], strides = [1, 1]} : vector<2x128xf32> to vector<2x32xf32>
    %399 = arith.mulf %396, %353 : vector<2x32xf32>
    %400 = arith.mulf %395, %397 : vector<2x32xf32>
    %401 = arith.addf %399, %400 : vector<2x32xf32>
    %402 = math.tanh %401 : vector<2x32xf32>
    %403 = arith.mulf %398, %402 : vector<2x32xf32>
    %c0_152 = arith.constant 0 : index
    %c0_153 = arith.constant 0 : index
    %c0_154 = arith.constant 0 : index
    %404 = vector.load %arg11[%c0_152, %c0_153, %c0_154] : memref<2x2x32xf32, #tpu.memory_space<vmem>>, vector<1x2x32xf32>
    %405 = vector.shape_cast %404 : vector<1x2x32xf32> to vector<2x32xf32>
    %406 = vector.shape_cast %376 : vector<2x32xf32> to vector<1x2x32xf32>
    tpu.vector_store %arg11[%c0_152, %c0_153, %c0_154], %406 {strides = array<i32>} : memref<2x2x32xf32, #tpu.memory_space<vmem>>, vector<1x2x32xf32>,
    %c0_155 = arith.constant 0 : index
    %c0_156 = arith.constant 0 : index
    %c0_157 = arith.constant 0 : index
    %407 = vector.load %arg12[%c0_155, %c0_156, %c0_157] : memref<2x2x32xf32, #tpu.memory_space<vmem>>, vector<1x2x32xf32>
    %408 = vector.shape_cast %407 : vector<1x2x32xf32> to vector<2x32xf32>
    %409 = vector.shape_cast %374 : vector<2x32xf32> to vector<1x2x32xf32>
    tpu.vector_store %arg12[%c0_155, %c0_156, %c0_157], %409 {strides = array<i32>} : memref<2x2x32xf32, #tpu.memory_space<vmem>>, vector<1x2x32xf32>,
    %c1_158 = arith.constant 1 : index
    %c0_159 = arith.constant 0 : index
    %c0_160 = arith.constant 0 : index
    %410 = vector.load %arg11[%c1_158, %c0_159, %c0_160] : memref<2x2x32xf32, #tpu.memory_space<vmem>>, vector<1x2x32xf32>
    %411 = vector.shape_cast %410 : vector<1x2x32xf32> to vector<2x32xf32>
    %412 = vector.shape_cast %403 : vector<2x32xf32> to vector<1x2x32xf32>
    tpu.vector_store %arg11[%c1_158, %c0_159, %c0_160], %412 {strides = array<i32>} : memref<2x2x32xf32, #tpu.memory_space<vmem>>, vector<1x2x32xf32>,
    %c1_161 = arith.constant 1 : index
    %c0_162 = arith.constant 0 : index
    %c0_163 = arith.constant 0 : index
    %413 = vector.load %arg12[%c1_161, %c0_162, %c0_163] : memref<2x2x32xf32, #tpu.memory_space<vmem>>, vector<1x2x32xf32>
    %414 = vector.shape_cast %413 : vector<1x2x32xf32> to vector<2x32xf32>
    %415 = vector.shape_cast %401 : vector<2x32xf32> to vector<1x2x32xf32>
    tpu.vector_store %arg12[%c1_161, %c0_162, %c0_163], %415 {strides = array<i32>} : memref<2x2x32xf32, #tpu.memory_space<vmem>>, vector<1x2x32xf32>,
    %c0_164 = arith.constant 0 : index
    %c0_165 = arith.constant 0 : index
    %416 = vector.load %arg6[%c0_164, %c0_165] : memref<32x4xf32, #tpu.memory_space<vmem>>, vector<32x4xf32>
    %cst_166 = arith.constant dense<0.000000e+00> : vector<2x4xf32>
    %417 = tpu.matmul %403, %416, %cst_166 {dimension_numbers = #tpu.dot_dimension_numbers<[1], [0], [0], [1], [0, 0, 1, 1], [], []>} : vector<2x32xf32>, vector<32x4xf32>, vector<2x4xf32> -> vector<2x4xf32>
    %c0_167 = arith.constant 0 : index
    %c0_168 = arith.constant 0 : index
    %418 = vector.load %arg7[%c0_167, %c0_168] : memref<1x4xf32, #tpu.memory_space<vmem>>, vector<1x4xf32>
    %419 = vector.broadcast %418 : vector<1x4xf32> to vector<2x4xf32>
    %420 = arith.addf %417, %419 : vector<2x4xf32>
    %c0_169 = arith.constant 0 : index
    %c0_170 = arith.constant 0 : index
    %421 = vector.load %arg10[%c0_169, %c0_170] : memref<2x4xf32, #tpu.memory_space<vmem>>, vector<2x4xf32>
    tpu.vector_store %arg10[%c0_169, %c0_170], %420 {strides = array<i32>} : memref<2x4xf32, #tpu.memory_space<vmem>>, vector<2x4xf32>,
    return
  }
}

</mosaic_0001>

<llo_original>
// kernel: tpu_custom_call.1
$region0: #{tpu_custom_call.1}
  #allocation0 [shape = 'u32[]', space=smem, size = 0x4, offset = 0x4, fixed_abs, tag = 'smem constant byte address 0x4 - core index']
  #allocation1 [shape = 'u32[72,128]{1,0:T(1,128)}', space=vmem, size = 0x9000, scoped, tag = 'internal scratch']
  %s0 = inlined_call_operand.vmem [shape: f32[16,16], index: 0, kind: input, shape index: {}]
  %s1 = inlined_call_operand.vmem [shape: f32[16,128], index: 1, kind: input, shape index: {}]
  %s2 = inlined_call_operand.hbm [shape: f32[1,128], index: 2, kind: input, shape index: {}]
  %s3 = inlined_call_operand.hbm [shape: f32[2,32,128], index: 3, kind: input, shape index: {}]
  %s4 = inlined_call_operand.hbm [shape: f32[2,1,128], index: 4, kind: input, shape index: {}]
  %s5 = inlined_call_operand.hbm [shape: f32[2,32,128], index: 5, kind: input, shape index: {}]
  %s6 = inlined_call_operand.vmem [shape: f32[32,4], index: 6, kind: input, shape index: {}]
  %s7 = inlined_call_operand.hbm [shape: f32[1,4], index: 7, kind: input, shape index: {}]
  %s8 = inlined_call_operand.vmem [shape: f32[2,2,32], index: 8, kind: input, shape index: {}]
  %s9 = inlined_call_operand.vmem [shape: f32[2,2,32], index: 9, kind: input, shape index: {}]
  %s10 = inlined_call_operand.hbm [shape: f32[2,4], index: 10, kind: output, shape index: {0}]
  %s11 = inlined_call_operand.hbm [shape: f32[2,2,32], index: 11, kind: output, shape index: {1}]
  %s12 = inlined_call_operand.hbm [shape: f32[2,2,32], index: 12, kind: output, shape index: {2}]
  %13 = xla_tuple %s10, %s11, %s12
  %s14 = sld [smem:[#allocation0]]
  $region86: #{tpu_custom_call.1} parent=0
    _
  %s16 = ssub.s32 1, %s14
  %s17 = scalar_select 0, %s16, %s14
  $region1: #{tpu_custom_call.1} parent=0
    #allocation2 [shape = 'u8[512]{0}', space=vmem, size = 0x400, scoped, tag = 'input window, operand 2, single buffered']
    #allocation3 [shape = 's32[1]{0}', space=sflag, size = 0x4, scoped, tag = 'scoped memory for tpu_custom_call.1']
    #allocation4 [shape = 's32[1]{0}', space=sflag, size = 0x4, scoped, tag = 'scoped memory for tpu_custom_call.1']
    #allocation5 [shape = 'u8[32768]{0}', space=vmem, size = 0x8000, scoped, tag = 'input window, operand 3, single buffered']
    #allocation6 [shape = 's32[1]{0}', space=sflag, size = 0x4, scoped, tag = 'scoped memory for tpu_custom_call.1']
    #allocation7 [shape = 'u8[1024]{0}', space=vmem, size = 0x400, scoped, tag = 'input window, operand 4, single buffered']
    #allocation8 [shape = 'u8[32768]{0}', space=vmem, size = 0x8000, scoped, tag = 'input window, operand 5, single buffered']
    #allocation9 [shape = 's32[1]{0}', space=sflag, size = 0x4, scoped, tag = 'scoped memory for tpu_custom_call.1']
    #allocation10 [shape = 'u8[512]{0}', space=vmem, size = 0x400, scoped, tag = 'input window, operand 7, single buffered']
    #allocation11 [shape = 'u8[1024]{0}', space=vmem, size = 0x400, scoped, tag = 'output window, operand 0, single buffered']
    #allocation12 [shape = 'u8[2048]{0}', space=vmem, size = 0x800, scoped, tag = 'output window, operand 1, single buffered']
    #allocation13 [shape = 's32[1]{0}', space=sflag, size = 0x4, scoped, tag = 'scoped memory for tpu_custom_call.1']
    #allocation14 [shape = 'u8[2048]{0}', space=vmem, size = 0x800, scoped, tag = 'output window, operand 2, single buffered']
    %18 = vsyncpa [#allocation3], 0
    %19 = vsyncpa [#allocation6], 0
    %20 = vsyncpa [#allocation9], 0
    %21 = vsyncpa [#allocation4], 0
    %22 = vsyncpa [#allocation13], 0
    // Predicated region
    $region2: #{tpu_custom_call.1} parent=1 // pred_check
      _
    $region3: #{tpu_custom_call.1} parent=1 // pred_check_branch
      %24 = sbr.rel (0) target = $region5
    $region4: #{tpu_custom_call.1} parent=1 // pred_region
      _
    $region5: #{tpu_custom_call.1} parent=1 // pred_fallthru
      _
    // Predicated region
    $region6: #{tpu_custom_call.1} parent=1 // pred_check
      _
    $region7: #{tpu_custom_call.1} parent=1 // pred_check_branch
      %26 = sbr.rel (0) target = $region9
    $region8: #{tpu_custom_call.1} parent=1 // pred_region
      _
    $region9: #{tpu_custom_call.1} parent=1 // pred_fallthru
      _
    // Predicated region
    $region10: #{tpu_custom_call.1} parent=1 // pred_check
      _
    $region11: #{tpu_custom_call.1} parent=1 // pred_check_branch
      %28 = sbr.rel (0) target = $region13
    $region12: #{tpu_custom_call.1} parent=1 // pred_region
      %30 = vsyncadd [#allocation3], 0
      %s32 = sshll.u32 %s2, 4
      %s33 = int_to_ptr.hbm [resolvable:$true] %s32
      %s34 = sshll.u32 [#allocation2], 4
      %s35 = int_to_ptr.vmem [resolvable:$true] %s34
      %37 = dma.hbm_to_vmem [thread:$0]  %s33, 16, %s35, [#allocation3]
    $region13: #{tpu_custom_call.1} parent=1 // pred_fallthru
      _
    // Predicated region
    $region14: #{tpu_custom_call.1} parent=1 // pred_check
      _
    $region15: #{tpu_custom_call.1} parent=1 // pred_check_branch
      %39 = sbr.rel (0) target = $region17
    $region16: #{tpu_custom_call.1} parent=1 // pred_region
      %41 = vsyncadd [#allocation6], 0
      %s42 = sshll.u32 %s3, 4
      %s43 = int_to_ptr.hbm [resolvable:$true] %s42
      %s44 = sshll.u32 [#allocation5], 4
      %s45 = int_to_ptr.vmem [resolvable:$true] %s44
      %50 = dma.hbm_to_vmem [thread:$0]  %s43, 1024, %s45, [#allocation6], 128, 128, 8
    $region17: #{tpu_custom_call.1} parent=1 // pred_fallthru
      _
    // Predicated region
    $region18: #{tpu_custom_call.1} parent=1 // pred_check
      _
    $region19: #{tpu_custom_call.1} parent=1 // pred_check_branch
      %52 = sbr.rel (0) target = $region21
    $region20: #{tpu_custom_call.1} parent=1 // pred_region
      %54 = vsyncadd [#allocation6], 0
      %s55 = sshll.u32 %s4, 4
      %s56 = int_to_ptr.hbm [resolvable:$true] %s55
      %s57 = sshll.u32 [#allocation7], 4
      %s58 = int_to_ptr.vmem [resolvable:$true] %s57
      %63 = dma.hbm_to_vmem [thread:$0]  %s56, 32, %s58, [#allocation6], 16, 16, 1
    $region21: #{tpu_custom_call.1} parent=1 // pred_fallthru
      _
    // Predicated region
    $region22: #{tpu_custom_call.1} parent=1 // pred_check
      _
    $region23: #{tpu_custom_call.1} parent=1 // pred_check_branch
      %65 = sbr.rel (0) target = $region25
    $region24: #{tpu_custom_call.1} parent=1 // pred_region
      %67 = vsyncadd [#allocation9], 0
      %s68 = sshll.u32 %s5, 4
      %s69 = int_to_ptr.hbm [resolvable:$true] %s68
      %s70 = sshll.u32 [#allocation8], 4
      %s71 = int_to_ptr.vmem [resolvable:$true] %s70
      %76 = dma.hbm_to_vmem [thread:$0]  %s69, 1024, %s71, [#allocation9], 128, 128, 8
    $region25: #{tpu_custom_call.1} parent=1 // pred_fallthru
      _
    // Predicated region
    $region26: #{tpu_custom_call.1} parent=1 // pred_check
      _
    $region27: #{tpu_custom_call.1} parent=1 // pred_check_branch
      %78 = sbr.rel (0) target = $region29
    $region28: #{tpu_custom_call.1} parent=1 // pred_region
      _
    $region29: #{tpu_custom_call.1} parent=1 // pred_fallthru
      _
    // Predicated region
    $region30: #{tpu_custom_call.1} parent=1 // pred_check
      _
    $region31: #{tpu_custom_call.1} parent=1 // pred_check_branch
      %80 = sbr.rel (0) target = $region33
    $region32: #{tpu_custom_call.1} parent=1 // pred_region
      %82 = vsyncadd [#allocation9], 0
      %s84 = sshll.u32 %s7, 4
      %s85 = int_to_ptr.hbm [resolvable:$true] %s84
      %s86 = sshll.u32 [#allocation10], 4
      %s87 = int_to_ptr.vmem [resolvable:$true] %s86
      %89 = dma.hbm_to_vmem [thread:$0]  %s85, 16, %s87, [#allocation9]
    $region33: #{tpu_custom_call.1} parent=1 // pred_fallthru
      _
    // Predicated region
    $region34: #{tpu_custom_call.1} parent=1 // pred_check
      _
    $region35: #{tpu_custom_call.1} parent=1 // pred_check_branch
      %91 = sbr.rel (0) target = $region37
    $region36: #{tpu_custom_call.1} parent=1 // pred_region
      _
    $region37: #{tpu_custom_call.1} parent=1 // pred_fallthru
      _
    // Predicated region
    $region38: #{tpu_custom_call.1} parent=1 // pred_check
      _
    $region39: #{tpu_custom_call.1} parent=1 // pred_check_branch
      %93 = sbr.rel (0) target = $region41
    $region40: #{tpu_custom_call.1} parent=1 // pred_region
      _
    $region41: #{tpu_custom_call.1} parent=1 // pred_fallthru
      _
    // Predicated region
    $region42: #{tpu_custom_call.1} parent=1 // pred_check
      _
    $region43: #{tpu_custom_call.1} parent=1 // pred_check_branch
      %95 = sbr.rel (0) target = $region45
    $region44: #{tpu_custom_call.1} parent=1 // pred_region
      %97 = dma.done [#allocation3], 16
    $region45: #{tpu_custom_call.1} parent=1 // pred_fallthru
      _
    // Predicated region
    $region46: #{tpu_custom_call.1} parent=1 // pred_check
      _
    $region47: #{tpu_custom_call.1} parent=1 // pred_check_branch
      %99 = sbr.rel (0) target = $region49
    $region48: #{tpu_custom_call.1} parent=1 // pred_region
      %101 = dma.done [#allocation6], 1024
    $region49: #{tpu_custom_call.1} parent=1 // pred_fallthru
      _
    // Predicated region
    $region50: #{tpu_custom_call.1} parent=1 // pred_check
      _
    $region51: #{tpu_custom_call.1} parent=1 // pred_check_branch
      %103 = sbr.rel (0) target = $region53
    $region52: #{tpu_custom_call.1} parent=1 // pred_region
      %105 = dma.done [#allocation6], 32
    $region53: #{tpu_custom_call.1} parent=1 // pred_fallthru
      _
    // Predicated region
    $region54: #{tpu_custom_call.1} parent=1 // pred_check
      _
    $region55: #{tpu_custom_call.1} parent=1 // pred_check_branch
      %107 = sbr.rel (0) target = $region57
    $region56: #{tpu_custom_call.1} parent=1 // pred_region
      %109 = dma.done [#allocation9], 1024
    $region57: #{tpu_custom_call.1} parent=1 // pred_fallthru
      _
    // Predicated region
    $region58: #{tpu_custom_call.1} parent=1 // pred_check
      _
    $region59: #{tpu_custom_call.1} parent=1 // pred_check_branch
      %111 = sbr.rel (0) target = $region61
    $region60: #{tpu_custom_call.1} parent=1 // pred_region
      %113 = dma.done [#allocation9], 16
    $region61: #{tpu_custom_call.1} parent=1 // pred_fallthru
      _
    %v114 = vld [vmem:[%s0] sm:$0xff]
    %v115 = vld [vmem:[%s0 + $0x8] sm:$0xff]
    %v116 = vld [vmem:[%s1] sm:$0xff]
    %v117 = vld [vmem:[%s1 + $0x8] sm:$0xff]
    %v118 = vld [vmem:[#allocation2] sm:$0x1]
    %v120 = vperm.slane %v118, 0
    %vm122 = vcmask 130048
    %v124 = vsel %vm122, %v114, 0
    %v127 = vsel %vm122, %v115, 0
    %129 = vmatpush.msra.mxu0 0.0
    %130 = vmatpush.msra.mxu0 0.0
    %131 = vmatpush.msra.mxu0 0.0
    %132 = vmatpush.msra.mxu0 0.0
    %133 = vmatpush.msra.mxu0 0.0
    %134 = vmatpush.msra.mxu0 0.0
    %135 = vmatpush.msra.mxu0 0.0
    %136 = vmatpush.msra.mxu0 0.0
    %137 = vmatpush.msra.mxu0 0.0
    %138 = vmatpush.msra.mxu0 0.0
    %139 = vmatpush.msra.mxu0 0.0
    %140 = vmatpush.msra.mxu0 0.0
    %141 = vmatpush.msra.mxu0 0.0
    %142 = vmatpush.msra.mxu0 0.0
    %143 = vmatpush.msra.mxu0 %v117
    %144 = vmatpush.msra.mxu0 %v116
    %145 = vmatmul.f32.gmra.mxu0 %v124
    %v146 = vpop.f32.mrf.mxu0
    %v147 = vadd.f32 %v120, %v146
    %148 = vmatmul.f32.gmra.mxu0 %v127
    %v149 = vpop.f32.mrf.mxu0
    %v150 = vadd.f32 %v120, %v149
    %151 = vdwg.mxu0
    %v152 = vlaneseq
    %v153 = vand.u32 %v152, 127
    %vm154 = vcmp.ge.s32.totalorder %v153, 64
    %vm155 = vcmp.lt.s32.totalorder %v153, 96
    %vm156 = vmand %vm154, %vm155
    %v157 = vld [vmem:[%s8] sm:$0x3]
    %s158 = scalar_lea.vmem %s8, 2
    %v159 = vld [vmem:[%s158] sm:$0x3]
    %v160 = vld [vmem:[%s9] sm:$0x3]
    %s161 = scalar_lea.vmem %s9, 2
    %v162 = vld [vmem:[%s161] sm:$0x3]
    %v163 = vld [vmem:[#allocation8] sm:$0xff]
    %v164 = vld [vmem:[#allocation8 + $0x8] sm:$0xff]
    %v165 = vld [vmem:[#allocation8 + $0x10] sm:$0xff]
    %v166 = vld [vmem:[#allocation8 + $0x18] sm:$0xff]
    %vm167 = vcmask 261120
    %v169 = vsel %vm167, %v157, 0
    %171 = vmatpush.msra.mxu0 0.0
    %172 = vmatpush.msra.mxu0 0.0
    %173 = vmatpush.msra.mxu0 0.0
    %174 = vmatpush.msra.mxu0 0.0
    %175 = vmatpush.msra.mxu0 0.0
    %176 = vmatpush.msra.mxu0 0.0
    %177 = vmatpush.msra.mxu0 0.0
    %178 = vmatpush.msra.mxu0 0.0
    %179 = vmatpush.msra.mxu0 0.0
    %180 = vmatpush.msra.mxu0 0.0
    %181 = vmatpush.msra.mxu0 0.0
    %182 = vmatpush.msra.mxu0 0.0
    %183 = vmatpush.msra.mxu0 %v166
    %184 = vmatpush.msra.mxu0 %v165
    %185 = vmatpush.msra.mxu0 %v164
    %186 = vmatpush.msra.mxu0 %v163
    %187 = vmatmul.f32.gmra.mxu0 %v169
    %v188 = vpop.f32.mrf.mxu0
    %v189 = vadd.f32 0.0, %v188
    %190 = vdwg.mxu0
    %v191 = vadd.f32 %v147, %v189
    %v192 = vxor.u32 %v191, 2147483648
    %v193 = vmul.f32 %v192, 1.442695
    %v194 = vpow.pop %v193
    %v195 = vadd.f32 %v194, 1.0
    %v196 = vrcp.pop %v195
    %v197 = vmul.f32 %v195, %v196
    %v198 = vsub.f32 1.0, %v197
    %v199 = vmul.f32 %v196, %v198
    %v200 = vadd.f32 %v196, %v199
    %vm201 = vweird.f32 %v195
    %vm202 = vweird.f32 %v196
    %vm203 = vmor %vm201, %vm202
    %v204 = vsel %vm203, %v196, %v200
    %v205 = vand.u32 2147483647, %v195
    %vm206 = vcmp.eq.f32.partialorder %v205, 8.507059e+37
    %v207 = vand.u32 %v195, 2147483648
    %v208 = vor.u32 1.1754944e-38, %v207
    %v209 = vsel %vm206, %v208, %v204
    %v210 = vmul.f32 1.0, %v209
    %v211 = vtanh.pop %v191
    %v212 = vsel %vm156, %v211, %v210
    %214 = vrot.lane.b32.xlu0 %v160, 32
    %v215 = vpop.permute.xlu0 %214
    %v217 = vmul.f32 %v212, %v215
    %219 = vrot.lane.b32.xlu0 %v212, 64
    %v220 = vpop.permute.xlu0 %219
    %v222 = vmul.f32 %v212, %v220
    %224 = vrot.lane.b32.xlu0 %v222, 32
    %v225 = vpop.permute.xlu0 %224
    %v227 = vadd.f32 %v217, %v225
    %v228 = vtanh.pop %v227
    %230 = vrot.lane.b32.xlu0 %v228, 64
    %v231 = vpop.permute.xlu0 %230
    %v233 = vmul.f32 %v212, %v231
    %s234 = scalar_lea.vmem [#allocation5], 32
    %v235 = vld [vmem:[%s234] sm:$0xff]
    %v236 = vld [vmem:[%s234 + $0x8] sm:$0xff]
    %v237 = vld [vmem:[%s234 + $0x10] sm:$0xff]
    %v238 = vld [vmem:[%s234 + $0x18] sm:$0xff]
    %s239 = scalar_lea.vmem [#allocation7], 1
    %v240 = vld [vmem:[%s239] sm:$0x1]
    %v242 = vperm.slane %v240, 0
    %245 = vrot.lane.b32.xlu0 %v233, 32
    %v246 = vpop.permute.xlu0 %245
    %v247 = vsel %vm167, %v246, 0
    %249 = vmatpush.msra.mxu0 0.0
    %250 = vmatpush.msra.mxu0 0.0
    %251 = vmatpush.msra.mxu0 0.0
    %252 = vmatpush.msra.mxu0 0.0
    %253 = vmatpush.msra.mxu0 0.0
    %254 = vmatpush.msra.mxu0 0.0
    %255 = vmatpush.msra.mxu0 0.0
    %256 = vmatpush.msra.mxu0 0.0
    %257 = vmatpush.msra.mxu0 0.0
    %258 = vmatpush.msra.mxu0 0.0
    %259 = vmatpush.msra.mxu0 0.0
    %260 = vmatpush.msra.mxu0 0.0
    %261 = vmatpush.msra.mxu0 %v238
    %262 = vmatpush.msra.mxu0 %v237
    %263 = vmatpush.msra.mxu0 %v236
    %264 = vmatpush.msra.mxu0 %v235
    %265 = vmatmul.f32.gmra.mxu0 %v247
    %v266 = vpop.f32.mrf.mxu0
    %v267 = vadd.f32 %v242, %v266
    %268 = vdwg.mxu0
    %s269 = scalar_lea.vmem [#allocation8], 32
    %v270 = vld [vmem:[%s269] sm:$0xff]
    %v271 = vld [vmem:[%s269 + $0x8] sm:$0xff]
    %v272 = vld [vmem:[%s269 + $0x10] sm:$0xff]
    %v273 = vld [vmem:[%s269 + $0x18] sm:$0xff]
    %v275 = vsel %vm167, %v159, 0
    %277 = vmatpush.msra.mxu0 0.0
    %278 = vmatpush.msra.mxu0 0.0
    %279 = vmatpush.msra.mxu0 0.0
    %280 = vmatpush.msra.mxu0 0.0
    %281 = vmatpush.msra.mxu0 0.0
    %282 = vmatpush.msra.mxu0 0.0
    %283 = vmatpush.msra.mxu0 0.0
    %284 = vmatpush.msra.mxu0 0.0
    %285 = vmatpush.msra.mxu0 0.0
    %286 = vmatpush.msra.mxu0 0.0
    %287 = vmatpush.msra.mxu0 0.0
    %288 = vmatpush.msra.mxu0 0.0
    %289 = vmatpush.msra.mxu0 %v273
    %290 = vmatpush.msra.mxu0 %v272
    %291 = vmatpush.msra.mxu0 %v271
    %292 = vmatpush.msra.mxu0 %v270
    %293 = vmatmul.f32.gmra.mxu0 %v275
    %v294 = vpop.f32.mrf.mxu0
    %v295 = vadd.f32 0.0, %v294
    %296 = vdwg.mxu0
    %v297 = vadd.f32 %v267, %v295
    %v298 = vxor.u32 %v297, 2147483648
    %v299 = vmul.f32 %v298, 1.442695
    %v300 = vpow.pop %v299
    %v301 = vadd.f32 %v300, 1.0
    %v302 = vrcp.pop %v301
    %v303 = vmul.f32 %v301, %v302
    %v304 = vsub.f32 1.0, %v303
    %v305 = vmul.f32 %v302, %v304
    %v306 = vadd.f32 %v302, %v305
    %vm307 = vweird.f32 %v301
    %vm308 = vweird.f32 %v302
    %vm309 = vmor %vm307, %vm308
    %v310 = vsel %vm309, %v302, %v306
    %v311 = vand.u32 2147483647, %v301
    %vm312 = vcmp.eq.f32.partialorder %v311, 8.507059e+37
    %v313 = vand.u32 %v301, 2147483648
    %v314 = vor.u32 1.1754944e-38, %v313
    %v315 = vsel %vm312, %v314, %v310
    %v316 = vmul.f32 1.0, %v315
    %v317 = vtanh.pop %v297
    %v318 = vsel %vm156, %v317, %v316
    %320 = vrot.lane.b32.xlu0 %v162, 32
    %v321 = vpop.permute.xlu0 %320
    %v323 = vmul.f32 %v318, %v321
    %325 = vrot.lane.b32.xlu0 %v318, 64
    %v326 = vpop.permute.xlu0 %325
    %v328 = vmul.f32 %v318, %v326
    %330 = vrot.lane.b32.xlu0 %v328, 32
    %v331 = vpop.permute.xlu0 %330
    %v333 = vadd.f32 %v323, %v331
    %v334 = vtanh.pop %v333
    %336 = vrot.lane.b32.xlu0 %v334, 64
    %v337 = vpop.permute.xlu0 %336
    %v339 = vmul.f32 %v318, %v337
    %340 = vmatpush.msra.mxu0 0.0
    %341 = vmatpush.msra.mxu0 0.0
    %342 = vmatpush.msra.mxu0 0.0
    %343 = vmatpush.msra.mxu0 0.0
    %344 = vmatpush.msra.mxu0 0.0
    %345 = vmatpush.msra.mxu0 0.0
    %346 = vmatpush.msra.mxu0 0.0
    %347 = vmatpush.msra.mxu0 0.0
    %348 = vmatpush.msra.mxu0 0.0
    %349 = vmatpush.msra.mxu0 0.0
    %350 = vmatpush.msra.mxu0 0.0
    %351 = vmatpush.msra.mxu0 0.0
    %352 = vmatpush.msra.mxu0 %v166
    %353 = vmatpush.msra.mxu0 %v165
    %354 = vmatpush.msra.mxu0 %v164
    %355 = vmatpush.msra.mxu0 %v163
    %356 = vmatmul.f32.gmra.mxu0 %v247
    %v357 = vpop.f32.mrf.mxu0
    %v358 = vadd.f32 0.0, %v357
    %359 = vdwg.mxu0
    %v361 = vrot.slane %v358, 6
    %v363 = vadd.f32 %v147, %v361
    %v364 = vxor.u32 %v363, 2147483648
    %v365 = vmul.f32 %v364, 1.442695
    %v366 = vpow.pop %v365
    %v367 = vadd.f32 %v366, 1.0
    %v368 = vrcp.pop %v367
    %v369 = vmul.f32 %v367, %v368
    %v370 = vsub.f32 1.0, %v369
    %v371 = vmul.f32 %v368, %v370
    %v372 = vadd.f32 %v368, %v371
    %vm373 = vweird.f32 %v367
    %vm374 = vweird.f32 %v368
    %vm375 = vmor %vm373, %vm374
    %v376 = vsel %vm375, %v368, %v372
    %v377 = vand.u32 2147483647, %v367
    %vm378 = vcmp.eq.f32.partialorder %v377, 8.507059e+37
    %v379 = vand.u32 %v367, 2147483648
    %v380 = vor.u32 1.1754944e-38, %v379
    %v381 = vsel %vm378, %v380, %v376
    %v382 = vmul.f32 1.0, %v381
    %v383 = vtanh.pop %v363
    %v384 = vsel %vm156, %v383, %v382
    %v386 = vrot.slane %v227, 6
    %v388 = vmul.f32 %v384, %v386
    %390 = vrot.lane.b32.xlu0 %v384, 64
    %v391 = vpop.permute.xlu0 %390
    %v393 = vmul.f32 %v384, %v391
    %395 = vrot.lane.b32.xlu0 %v393, 32
    %v396 = vpop.permute.xlu0 %395
    %v398 = vadd.f32 %v388, %v396
    %v399 = vtanh.pop %v398
    %401 = vrot.lane.b32.xlu0 %v399, 64
    %v402 = vpop.permute.xlu0 %401
    %v404 = vmul.f32 %v384, %v402
    %v406 = vrot.slane %v404, 2
    %407 = vrot.lane.b32.xlu0 %v406, 32
    %v408 = vpop.permute.xlu0 %407
    %v409 = vsel %vm167, %v408, 0
    %411 = vmatpush.msra.mxu0 0.0
    %412 = vmatpush.msra.mxu0 0.0
    %413 = vmatpush.msra.mxu0 0.0
    %414 = vmatpush.msra.mxu0 0.0
    %415 = vmatpush.msra.mxu0 0.0
    %416 = vmatpush.msra.mxu0 0.0
    %417 = vmatpush.msra.mxu0 0.0
    %418 = vmatpush.msra.mxu0 0.0
    %419 = vmatpush.msra.mxu0 0.0
    %420 = vmatpush.msra.mxu0 0.0
    %421 = vmatpush.msra.mxu0 0.0
    %422 = vmatpush.msra.mxu0 0.0
    %423 = vmatpush.msra.mxu0 %v238
    %424 = vmatpush.msra.mxu0 %v237
    %425 = vmatpush.msra.mxu0 %v236
    %426 = vmatpush.msra.mxu0 %v235
    %427 = vmatmul.f32.gmra.mxu0 %v409
    %v428 = vpop.f32.mrf.mxu0
    %v429 = vadd.f32 %v242, %v428
    %430 = vdwg.mxu0
    %432 = vrot.lane.b32.xlu0 %v339, 32
    %v433 = vpop.permute.xlu0 %432
    %v434 = vsel %vm167, %v433, 0
    %436 = vmatpush.msra.mxu0 0.0
    %437 = vmatpush.msra.mxu0 0.0
    %438 = vmatpush.msra.mxu0 0.0
    %439 = vmatpush.msra.mxu0 0.0
    %440 = vmatpush.msra.mxu0 0.0
    %441 = vmatpush.msra.mxu0 0.0
    %442 = vmatpush.msra.mxu0 0.0
    %443 = vmatpush.msra.mxu0 0.0
    %444 = vmatpush.msra.mxu0 0.0
    %445 = vmatpush.msra.mxu0 0.0
    %446 = vmatpush.msra.mxu0 0.0
    %447 = vmatpush.msra.mxu0 0.0
    %448 = vmatpush.msra.mxu0 %v273
    %449 = vmatpush.msra.mxu0 %v272
    %450 = vmatpush.msra.mxu0 %v271
    %451 = vmatpush.msra.mxu0 %v270
    %452 = vmatmul.f32.gmra.mxu0 %v434
    %v453 = vpop.f32.mrf.mxu0
    %v454 = vadd.f32 0.0, %v453
    %455 = vdwg.mxu0
    %v456 = vadd.f32 %v429, %v454
    %v457 = vxor.u32 %v456, 2147483648
    %v458 = vmul.f32 %v457, 1.442695
    %v459 = vpow.pop %v458
    %v460 = vadd.f32 %v459, 1.0
    %v461 = vrcp.pop %v460
    %v462 = vmul.f32 %v460, %v461
    %v463 = vsub.f32 1.0, %v462
    %v464 = vmul.f32 %v461, %v463
    %v465 = vadd.f32 %v461, %v464
    %vm466 = vweird.f32 %v460
    %vm467 = vweird.f32 %v461
    %vm468 = vmor %vm466, %vm467
    %v469 = vsel %vm468, %v461, %v465
    %v470 = vand.u32 2147483647, %v460
    %vm471 = vcmp.eq.f32.partialorder %v470, 8.507059e+37
    %v472 = vand.u32 %v460, 2147483648
    %v473 = vor.u32 1.1754944e-38, %v472
    %v474 = vsel %vm471, %v473, %v469
    %v475 = vmul.f32 1.0, %v474
    %v476 = vtanh.pop %v456
    %v477 = vsel %vm156, %v476, %v475
    %v478 = vmul.f32 %v477, %v333
    %480 = vrot.lane.b32.xlu0 %v477, 64
    %v481 = vpop.permute.xlu0 %480
    %v483 = vmul.f32 %v477, %v481
    %485 = vrot.lane.b32.xlu0 %v483, 32
    %v486 = vpop.permute.xlu0 %485
    %v488 = vadd.f32 %v478, %v486
    %v489 = vtanh.pop %v488
    %491 = vrot.lane.b32.xlu0 %v489, 64
    %v492 = vpop.permute.xlu0 %491
    %v494 = vmul.f32 %v477, %v492
    %495 = vmatpush.msra.mxu0 0.0
    %496 = vmatpush.msra.mxu0 0.0
    %497 = vmatpush.msra.mxu0 0.0
    %498 = vmatpush.msra.mxu0 0.0
    %499 = vmatpush.msra.mxu0 0.0
    %500 = vmatpush.msra.mxu0 0.0
    %501 = vmatpush.msra.mxu0 0.0
    %502 = vmatpush.msra.mxu0 0.0
    %503 = vmatpush.msra.mxu0 0.0
    %504 = vmatpush.msra.mxu0 0.0
    %505 = vmatpush.msra.mxu0 0.0
    %506 = vmatpush.msra.mxu0 0.0
    %507 = vmatpush.msra.mxu0 %v166
    %508 = vmatpush.msra.mxu0 %v165
    %509 = vmatpush.msra.mxu0 %v164
    %510 = vmatpush.msra.mxu0 %v163
    %511 = vmatmul.f32.gmra.mxu0 %v409
    %v512 = vpop.f32.mrf.mxu0
    %v513 = vadd.f32 0.0, %v512
    %514 = vdwg.mxu0
    %v516 = vrot.slane %v513, 4
    %v518 = vadd.f32 %v147, %v516
    %v519 = vxor.u32 %v518, 2147483648
    %v520 = vmul.f32 %v519, 1.442695
    %v521 = vpow.pop %v520
    %v522 = vadd.f32 %v521, 1.0
    %v523 = vrcp.pop %v522
    %v524 = vmul.f32 %v522, %v523
    %v525 = vsub.f32 1.0, %v524
    %v526 = vmul.f32 %v523, %v525
    %v527 = vadd.f32 %v523, %v526
    %vm528 = vweird.f32 %v522
    %vm529 = vweird.f32 %v523
    %vm530 = vmor %vm528, %vm529
    %v531 = vsel %vm530, %v523, %v527
    %v532 = vand.u32 2147483647, %v522
    %vm533 = vcmp.eq.f32.partialorder %v532, 8.507059e+37
    %v534 = vand.u32 %v522, 2147483648
    %v535 = vor.u32 1.1754944e-38, %v534
    %v536 = vsel %vm533, %v535, %v531
    %v537 = vmul.f32 1.0, %v536
    %v538 = vtanh.pop %v518
    %v539 = vsel %vm156, %v538, %v537
    %v541 = vrot.slane %v398, 6
    %v543 = vmul.f32 %v539, %v541
    %545 = vrot.lane.b32.xlu0 %v539, 64
    %v546 = vpop.permute.xlu0 %545
    %v548 = vmul.f32 %v539, %v546
    %550 = vrot.lane.b32.xlu0 %v548, 32
    %v551 = vpop.permute.xlu0 %550
    %v553 = vadd.f32 %v543, %v551
    %v554 = vtanh.pop %v553
    %556 = vrot.lane.b32.xlu0 %v554, 64
    %v557 = vpop.permute.xlu0 %556
    %v559 = vmul.f32 %v539, %v557
    %v561 = vrot.slane %v559, 4
    %562 = vrot.lane.b32.xlu0 %v561, 32
    %v563 = vpop.permute.xlu0 %562
    %v564 = vsel %vm167, %v563, 0
    %566 = vmatpush.msra.mxu0 0.0
    %567 = vmatpush.msra.mxu0 0.0
    %568 = vmatpush.msra.mxu0 0.0
    %569 = vmatpush.msra.mxu0 0.0
    %570 = vmatpush.msra.mxu0 0.0
    %571 = vmatpush.msra.mxu0 0.0
    %572 = vmatpush.msra.mxu0 0.0
    %573 = vmatpush.msra.mxu0 0.0
    %574 = vmatpush.msra.mxu0 0.0
    %575 = vmatpush.msra.mxu0 0.0
    %576 = vmatpush.msra.mxu0 0.0
    %577 = vmatpush.msra.mxu0 0.0
    %578 = vmatpush.msra.mxu0 %v238
    %579 = vmatpush.msra.mxu0 %v237
    %580 = vmatpush.msra.mxu0 %v236
    %581 = vmatpush.msra.mxu0 %v235
    %582 = vmatmul.f32.gmra.mxu0 %v564
    %v583 = vpop.f32.mrf.mxu0
    %v584 = vadd.f32 %v242, %v583
    %585 = vdwg.mxu0
    %587 = vrot.lane.b32.xlu0 %v494, 32
    %v588 = vpop.permute.xlu0 %587
    %v589 = vsel %vm167, %v588, 0
    %591 = vmatpush.msra.mxu0 0.0
    %592 = vmatpush.msra.mxu0 0.0
    %593 = vmatpush.msra.mxu0 0.0
    %594 = vmatpush.msra.mxu0 0.0
    %595 = vmatpush.msra.mxu0 0.0
    %596 = vmatpush.msra.mxu0 0.0
    %597 = vmatpush.msra.mxu0 0.0
    %598 = vmatpush.msra.mxu0 0.0
    %599 = vmatpush.msra.mxu0 0.0
    %600 = vmatpush.msra.mxu0 0.0
    %601 = vmatpush.msra.mxu0 0.0
    %602 = vmatpush.msra.mxu0 0.0
    %603 = vmatpush.msra.mxu0 %v273
    %604 = vmatpush.msra.mxu0 %v272
    %605 = vmatpush.msra.mxu0 %v271
    %606 = vmatpush.msra.mxu0 %v270
    %607 = vmatmul.f32.gmra.mxu0 %v589
    %v608 = vpop.f32.mrf.mxu0
    %v609 = vadd.f32 0.0, %v608
    %610 = vdwg.mxu0
    %v611 = vadd.f32 %v584, %v609
    %v612 = vxor.u32 %v611, 2147483648
    %v613 = vmul.f32 %v612, 1.442695
    %v614 = vpow.pop %v613
    %v615 = vadd.f32 %v614, 1.0
    %v616 = vrcp.pop %v615
    %v617 = vmul.f32 %v615, %v616
    %v618 = vsub.f32 1.0, %v617
    %v619 = vmul.f32 %v616, %v618
    %v620 = vadd.f32 %v616, %v619
    %vm621 = vweird.f32 %v615
    %vm622 = vweird.f32 %v616
    %vm623 = vmor %vm621, %vm622
    %v624 = vsel %vm623, %v616, %v620
    %v625 = vand.u32 2147483647, %v615
    %vm626 = vcmp.eq.f32.partialorder %v625, 8.507059e+37
    %v627 = vand.u32 %v615, 2147483648
    %v628 = vor.u32 1.1754944e-38, %v627
    %v629 = vsel %vm626, %v628, %v624
    %v630 = vmul.f32 1.0, %v629
    %v631 = vtanh.pop %v611
    %v632 = vsel %vm156, %v631, %v630
    %v633 = vmul.f32 %v632, %v488
    %635 = vrot.lane.b32.xlu0 %v632, 64
    %v636 = vpop.permute.xlu0 %635
    %v638 = vmul.f32 %v632, %v636
    %640 = vrot.lane.b32.xlu0 %v638, 32
    %v641 = vpop.permute.xlu0 %640
    %v643 = vadd.f32 %v633, %v641
    %v644 = vtanh.pop %v643
    %646 = vrot.lane.b32.xlu0 %v644, 64
    %v647 = vpop.permute.xlu0 %646
    %v649 = vmul.f32 %v632, %v647
    %650 = vmatpush.msra.mxu0 0.0
    %651 = vmatpush.msra.mxu0 0.0
    %652 = vmatpush.msra.mxu0 0.0
    %653 = vmatpush.msra.mxu0 0.0
    %654 = vmatpush.msra.mxu0 0.0
    %655 = vmatpush.msra.mxu0 0.0
    %656 = vmatpush.msra.mxu0 0.0
    %657 = vmatpush.msra.mxu0 0.0
    %658 = vmatpush.msra.mxu0 0.0
    %659 = vmatpush.msra.mxu0 0.0
    %660 = vmatpush.msra.mxu0 0.0
    %661 = vmatpush.msra.mxu0 0.0
    %662 = vmatpush.msra.mxu0 %v166
    %663 = vmatpush.msra.mxu0 %v165
    %664 = vmatpush.msra.mxu0 %v164
    %665 = vmatpush.msra.mxu0 %v163
    %666 = vmatmul.f32.gmra.mxu0 %v564
    %v667 = vpop.f32.mrf.mxu0
    %v668 = vadd.f32 0.0, %v667
    %669 = vdwg.mxu0
    %v671 = vrot.slane %v668, 2
    %v673 = vadd.f32 %v147, %v671
    %v674 = vxor.u32 %v673, 2147483648
    %v675 = vmul.f32 %v674, 1.442695
    %v676 = vpow.pop %v675
    %v677 = vadd.f32 %v676, 1.0
    %v678 = vrcp.pop %v677
    %v679 = vmul.f32 %v677, %v678
    %v680 = vsub.f32 1.0, %v679
    %v681 = vmul.f32 %v678, %v680
    %v682 = vadd.f32 %v678, %v681
    %vm683 = vweird.f32 %v677
    %vm684 = vweird.f32 %v678
    %vm685 = vmor %vm683, %vm684
    %v686 = vsel %vm685, %v678, %v682
    %v687 = vand.u32 2147483647, %v677
    %vm688 = vcmp.eq.f32.partialorder %v687, 8.507059e+37
    %v689 = vand.u32 %v677, 2147483648
    %v690 = vor.u32 1.1754944e-38, %v689
    %v691 = vsel %vm688, %v690, %v686
    %v692 = vmul.f32 1.0, %v691
    %v693 = vtanh.pop %v673
    %v694 = vsel %vm156, %v693, %v692
    %v696 = vrot.slane %v553, 6
    %v698 = vmul.f32 %v694, %v696
    %700 = vrot.lane.b32.xlu0 %v694, 64
    %v701 = vpop.permute.xlu0 %700
    %v703 = vmul.f32 %v694, %v701
    %705 = vrot.lane.b32.xlu0 %v703, 32
    %v706 = vpop.permute.xlu0 %705
    %v708 = vadd.f32 %v698, %v706
    %v709 = vtanh.pop %v708
    %711 = vrot.lane.b32.xlu0 %v709, 64
    %v712 = vpop.permute.xlu0 %711
    %v714 = vmul.f32 %v694, %v712
    %v716 = vrot.slane %v714, 6
    %717 = vrot.lane.b32.xlu0 %v716, 32
    %v718 = vpop.permute.xlu0 %717
    %v719 = vsel %vm167, %v718, 0
    %721 = vmatpush.msra.mxu0 0.0
    %722 = vmatpush.msra.mxu0 0.0
    %723 = vmatpush.msra.mxu0 0.0
    %724 = vmatpush.msra.mxu0 0.0
    %725 = vmatpush.msra.mxu0 0.0
    %726 = vmatpush.msra.mxu0 0.0
    %727 = vmatpush.msra.mxu0 0.0
    %728 = vmatpush.msra.mxu0 0.0
    %729 = vmatpush.msra.mxu0 0.0
    %730 = vmatpush.msra.mxu0 0.0
    %731 = vmatpush.msra.mxu0 0.0
    %732 = vmatpush.msra.mxu0 0.0
    %733 = vmatpush.msra.mxu0 %v238
    %734 = vmatpush.msra.mxu0 %v237
    %735 = vmatpush.msra.mxu0 %v236
    %736 = vmatpush.msra.mxu0 %v235
    %737 = vmatmul.f32.gmra.mxu0 %v719
    %v738 = vpop.f32.mrf.mxu0
    %v739 = vadd.f32 %v242, %v738
    %740 = vdwg.mxu0
    %742 = vrot.lane.b32.xlu0 %v649, 32
    %v743 = vpop.permute.xlu0 %742
    %v744 = vsel %vm167, %v743, 0
    %746 = vmatpush.msra.mxu0 0.0
    %747 = vmatpush.msra.mxu0 0.0
    %748 = vmatpush.msra.mxu0 0.0
    %749 = vmatpush.msra.mxu0 0.0
    %750 = vmatpush.msra.mxu0 0.0
    %751 = vmatpush.msra.mxu0 0.0
    %752 = vmatpush.msra.mxu0 0.0
    %753 = vmatpush.msra.mxu0 0.0
    %754 = vmatpush.msra.mxu0 0.0
    %755 = vmatpush.msra.mxu0 0.0
    %756 = vmatpush.msra.mxu0 0.0
    %757 = vmatpush.msra.mxu0 0.0
    %758 = vmatpush.msra.mxu0 %v273
    %759 = vmatpush.msra.mxu0 %v272
    %760 = vmatpush.msra.mxu0 %v271
    %761 = vmatpush.msra.mxu0 %v270
    %762 = vmatmul.f32.gmra.mxu0 %v744
    %v763 = vpop.f32.mrf.mxu0
    %v764 = vadd.f32 0.0, %v763
    %765 = vdwg.mxu0
    %v766 = vadd.f32 %v739, %v764
    %v767 = vxor.u32 %v766, 2147483648
    %v768 = vmul.f32 %v767, 1.442695
    %v769 = vpow.pop %v768
    %v770 = vadd.f32 %v769, 1.0
    %v771 = vrcp.pop %v770
    %v772 = vmul.f32 %v770, %v771
    %v773 = vsub.f32 1.0, %v772
    %v774 = vmul.f32 %v771, %v773
    %v775 = vadd.f32 %v771, %v774
    %vm776 = vweird.f32 %v770
    %vm777 = vweird.f32 %v771
    %vm778 = vmor %vm776, %vm777
    %v779 = vsel %vm778, %v771, %v775
    %v780 = vand.u32 2147483647, %v770
    %vm781 = vcmp.eq.f32.partialorder %v780, 8.507059e+37
    %v782 = vand.u32 %v770, 2147483648
    %v783 = vor.u32 1.1754944e-38, %v782
    %v784 = vsel %vm781, %v783, %v779
    %v785 = vmul.f32 1.0, %v784
    %v786 = vtanh.pop %v766
    %v787 = vsel %vm156, %v786, %v785
    %v788 = vmul.f32 %v787, %v643
    %790 = vrot.lane.b32.xlu0 %v787, 64
    %v791 = vpop.permute.xlu0 %790
    %v793 = vmul.f32 %v787, %v791
    %795 = vrot.lane.b32.xlu0 %v793, 32
    %v796 = vpop.permute.xlu0 %795
    %v798 = vadd.f32 %v788, %v796
    %v799 = vtanh.pop %v798
    %801 = vrot.lane.b32.xlu0 %v799, 64
    %v802 = vpop.permute.xlu0 %801
    %v804 = vmul.f32 %v787, %v802
    %805 = vmatpush.msra.mxu0 0.0
    %806 = vmatpush.msra.mxu0 0.0
    %807 = vmatpush.msra.mxu0 0.0
    %808 = vmatpush.msra.mxu0 0.0
    %809 = vmatpush.msra.mxu0 0.0
    %810 = vmatpush.msra.mxu0 0.0
    %811 = vmatpush.msra.mxu0 0.0
    %812 = vmatpush.msra.mxu0 0.0
    %813 = vmatpush.msra.mxu0 0.0
    %814 = vmatpush.msra.mxu0 0.0
    %815 = vmatpush.msra.mxu0 0.0
    %816 = vmatpush.msra.mxu0 0.0
    %817 = vmatpush.msra.mxu0 %v166
    %818 = vmatpush.msra.mxu0 %v165
    %819 = vmatpush.msra.mxu0 %v164
    %820 = vmatpush.msra.mxu0 %v163
    %821 = vmatmul.f32.gmra.mxu0 %v719
    %v822 = vpop.f32.mrf.mxu0
    %v823 = vadd.f32 0.0, %v822
    %824 = vdwg.mxu0
    %v825 = vadd.f32 %v150, %v823
    %v826 = vxor.u32 %v825, 2147483648
    %v827 = vmul.f32 %v826, 1.442695
    %v828 = vpow.pop %v827
    %v829 = vadd.f32 %v828, 1.0
    %v830 = vrcp.pop %v829
    %v831 = vmul.f32 %v829, %v830
    %v832 = vsub.f32 1.0, %v831
    %v833 = vmul.f32 %v830, %v832
    %v834 = vadd.f32 %v830, %v833
    %vm835 = vweird.f32 %v829
    %vm836 = vweird.f32 %v830
    %vm837 = vmor %vm835, %vm836
    %v838 = vsel %vm837, %v830, %v834
    %v839 = vand.u32 2147483647, %v829
    %vm840 = vcmp.eq.f32.partialorder %v839, 8.507059e+37
    %v841 = vand.u32 %v829, 2147483648
    %v842 = vor.u32 1.1754944e-38, %v841
    %v843 = vsel %vm840, %v842, %v838
    %v844 = vmul.f32 1.0, %v843
    %v845 = vtanh.pop %v825
    %v846 = vsel %vm156, %v845, %v844
    %v848 = vrot.slane %v708, 6
    %v850 = vmul.f32 %v846, %v848
    %852 = vrot.lane.b32.xlu0 %v846, 64
    %v853 = vpop.permute.xlu0 %852
    %v855 = vmul.f32 %v846, %v853
    %857 = vrot.lane.b32.xlu0 %v855, 32
    %v858 = vpop.permute.xlu0 %857
    %v860 = vadd.f32 %v850, %v858
    %v861 = vtanh.pop %v860
    %863 = vrot.lane.b32.xlu0 %v861, 64
    %v864 = vpop.permute.xlu0 %863
    %v866 = vmul.f32 %v846, %v864
    %868 = vrot.lane.b32.xlu0 %v866, 32
    %v869 = vpop.permute.xlu0 %868
    %v870 = vsel %vm167, %v869, 0
    %872 = vmatpush.msra.mxu0 0.0
    %873 = vmatpush.msra.mxu0 0.0
    %874 = vmatpush.msra.mxu0 0.0
    %875 = vmatpush.msra.mxu0 0.0
    %876 = vmatpush.msra.mxu0 0.0
    %877 = vmatpush.msra.mxu0 0.0
    %878 = vmatpush.msra.mxu0 0.0
    %879 = vmatpush.msra.mxu0 0.0
    %880 = vmatpush.msra.mxu0 0.0
    %881 = vmatpush.msra.mxu0 0.0
    %882 = vmatpush.msra.mxu0 0.0
    %883 = vmatpush.msra.mxu0 0.0
    %884 = vmatpush.msra.mxu0 %v238
    %885 = vmatpush.msra.mxu0 %v237
    %886 = vmatpush.msra.mxu0 %v236
    %887 = vmatpush.msra.mxu0 %v235
    %888 = vmatmul.f32.gmra.mxu0 %v870
    %v889 = vpop.f32.mrf.mxu0
    %v890 = vadd.f32 %v242, %v889
    %891 = vdwg.mxu0
    %893 = vrot.lane.b32.xlu0 %v804, 32
    %v894 = vpop.permute.xlu0 %893
    %v895 = vsel %vm167, %v894, 0
    %897 = vmatpush.msra.mxu0 0.0
    %898 = vmatpush.msra.mxu0 0.0
    %899 = vmatpush.msra.mxu0 0.0
    %900 = vmatpush.msra.mxu0 0.0
    %901 = vmatpush.msra.mxu0 0.0
    %902 = vmatpush.msra.mxu0 0.0
    %903 = vmatpush.msra.mxu0 0.0
    %904 = vmatpush.msra.mxu0 0.0
    %905 = vmatpush.msra.mxu0 0.0
    %906 = vmatpush.msra.mxu0 0.0
    %907 = vmatpush.msra.mxu0 0.0
    %908 = vmatpush.msra.mxu0 0.0
    %909 = vmatpush.msra.mxu0 %v273
    %910 = vmatpush.msra.mxu0 %v272
    %911 = vmatpush.msra.mxu0 %v271
    %912 = vmatpush.msra.mxu0 %v270
    %913 = vmatmul.f32.gmra.mxu0 %v895
    %v914 = vpop.f32.mrf.mxu0
    %v915 = vadd.f32 0.0, %v914
    %916 = vdwg.mxu0
    %v917 = vadd.f32 %v890, %v915
    %v918 = vxor.u32 %v917, 2147483648
    %v919 = vmul.f32 %v918, 1.442695
    %v920 = vpow.pop %v919
    %v921 = vadd.f32 %v920, 1.0
    %v922 = vrcp.pop %v921
    %v923 = vmul.f32 %v921, %v922
    %v924 = vsub.f32 1.0, %v923
    %v925 = vmul.f32 %v922, %v924
    %v926 = vadd.f32 %v922, %v925
    %vm927 = vweird.f32 %v921
    %vm928 = vweird.f32 %v922
    %vm929 = vmor %vm927, %vm928
    %v930 = vsel %vm929, %v922, %v926
    %v931 = vand.u32 2147483647, %v921
    %vm932 = vcmp.eq.f32.partialorder %v931, 8.507059e+37
    %v933 = vand.u32 %v921, 2147483648
    %v934 = vor.u32 1.1754944e-38, %v933
    %v935 = vsel %vm932, %v934, %v930
    %v936 = vmul.f32 1.0, %v935
    %v937 = vtanh.pop %v917
    %v938 = vsel %vm156, %v937, %v936
    %v939 = vmul.f32 %v938, %v798
    %941 = vrot.lane.b32.xlu0 %v938, 64
    %v942 = vpop.permute.xlu0 %941
    %v944 = vmul.f32 %v938, %v942
    %946 = vrot.lane.b32.xlu0 %v944, 32
    %v947 = vpop.permute.xlu0 %946
    %v949 = vadd.f32 %v939, %v947
    %v950 = vtanh.pop %v949
    %952 = vrot.lane.b32.xlu0 %v950, 64
    %v953 = vpop.permute.xlu0 %952
    %v955 = vmul.f32 %v938, %v953
    %956 = vmatpush.msra.mxu0 0.0
    %957 = vmatpush.msra.mxu0 0.0
    %958 = vmatpush.msra.mxu0 0.0
    %959 = vmatpush.msra.mxu0 0.0
    %960 = vmatpush.msra.mxu0 0.0
    %961 = vmatpush.msra.mxu0 0.0
    %962 = vmatpush.msra.mxu0 0.0
    %963 = vmatpush.msra.mxu0 0.0
    %964 = vmatpush.msra.mxu0 0.0
    %965 = vmatpush.msra.mxu0 0.0
    %966 = vmatpush.msra.mxu0 0.0
    %967 = vmatpush.msra.mxu0 0.0
    %968 = vmatpush.msra.mxu0 %v166
    %969 = vmatpush.msra.mxu0 %v165
    %970 = vmatpush.msra.mxu0 %v164
    %971 = vmatpush.msra.mxu0 %v163
    %972 = vmatmul.f32.gmra.mxu0 %v870
    %v973 = vpop.f32.mrf.mxu0
    %v974 = vadd.f32 0.0, %v973
    %975 = vdwg.mxu0
    %v977 = vrot.slane %v974, 6
    %v979 = vadd.f32 %v150, %v977
    %v980 = vxor.u32 %v979, 2147483648
    %v981 = vmul.f32 %v980, 1.442695
    %v982 = vpow.pop %v981
    %v983 = vadd.f32 %v982, 1.0
    %v984 = vrcp.pop %v983
    %v985 = vmul.f32 %v983, %v984
    %v986 = vsub.f32 1.0, %v985
    %v987 = vmul.f32 %v984, %v986
    %v988 = vadd.f32 %v984, %v987
    %vm989 = vweird.f32 %v983
    %vm990 = vweird.f32 %v984
    %vm991 = vmor %vm989, %vm990
    %v992 = vsel %vm991, %v984, %v988
    %v993 = vand.u32 2147483647, %v983
    %vm994 = vcmp.eq.f32.partialorder %v993, 8.507059e+37
    %v995 = vand.u32 %v983, 2147483648
    %v996 = vor.u32 1.1754944e-38, %v995
    %v997 = vsel %vm994, %v996, %v992
    %v998 = vmul.f32 1.0, %v997
    %v999 = vtanh.pop %v979
    %v1000 = vsel %vm156, %v999, %v998
    %v1002 = vrot.slane %v860, 6
    %v1004 = vmul.f32 %v1000, %v1002
    %1006 = vrot.lane.b32.xlu0 %v1000, 64
    %v1007 = vpop.permute.xlu0 %1006
    %v1009 = vmul.f32 %v1000, %v1007
    %1011 = vrot.lane.b32.xlu0 %v1009, 32
    %v1012 = vpop.permute.xlu0 %1011
    %v1014 = vadd.f32 %v1004, %v1012
    %v1015 = vtanh.pop %v1014
    %1017 = vrot.lane.b32.xlu0 %v1015, 64
    %v1018 = vpop.permute.xlu0 %1017
    %v1020 = vmul.f32 %v1000, %v1018
    %v1022 = vrot.slane %v1020, 2
    %1023 = vrot.lane.b32.xlu0 %v1022, 32
    %v1024 = vpop.permute.xlu0 %1023
    %v1025 = vsel %vm167, %v1024, 0
    %1027 = vmatpush.msra.mxu0 0.0
    %1028 = vmatpush.msra.mxu0 0.0
    %1029 = vmatpush.msra.mxu0 0.0
    %1030 = vmatpush.msra.mxu0 0.0
    %1031 = vmatpush.msra.mxu0 0.0
    %1032 = vmatpush.msra.mxu0 0.0
    %1033 = vmatpush.msra.mxu0 0.0
    %1034 = vmatpush.msra.mxu0 0.0
    %1035 = vmatpush.msra.mxu0 0.0
    %1036 = vmatpush.msra.mxu0 0.0
    %1037 = vmatpush.msra.mxu0 0.0
    %1038 = vmatpush.msra.mxu0 0.0
    %1039 = vmatpush.msra.mxu0 %v238
    %1040 = vmatpush.msra.mxu0 %v237
    %1041 = vmatpush.msra.mxu0 %v236
    %1042 = vmatpush.msra.mxu0 %v235
    %1043 = vmatmul.f32.gmra.mxu0 %v1025
    %v1044 = vpop.f32.mrf.mxu0
    %v1045 = vadd.f32 %v242, %v1044
    %1046 = vdwg.mxu0
    %1048 = vrot.lane.b32.xlu0 %v955, 32
    %v1049 = vpop.permute.xlu0 %1048
    %v1050 = vsel %vm167, %v1049, 0
    %1052 = vmatpush.msra.mxu0 0.0
    %1053 = vmatpush.msra.mxu0 0.0
    %1054 = vmatpush.msra.mxu0 0.0
    %1055 = vmatpush.msra.mxu0 0.0
    %1056 = vmatpush.msra.mxu0 0.0
    %1057 = vmatpush.msra.mxu0 0.0
    %1058 = vmatpush.msra.mxu0 0.0
    %1059 = vmatpush.msra.mxu0 0.0
    %1060 = vmatpush.msra.mxu0 0.0
    %1061 = vmatpush.msra.mxu0 0.0
    %1062 = vmatpush.msra.mxu0 0.0
    %1063 = vmatpush.msra.mxu0 0.0
    %1064 = vmatpush.msra.mxu0 %v273
    %1065 = vmatpush.msra.mxu0 %v272
    %1066 = vmatpush.msra.mxu0 %v271
    %1067 = vmatpush.msra.mxu0 %v270
    %1068 = vmatmul.f32.gmra.mxu0 %v1050
    %v1069 = vpop.f32.mrf.mxu0
    %v1070 = vadd.f32 0.0, %v1069
    %1071 = vdwg.mxu0
    %v1072 = vadd.f32 %v1045, %v1070
    %v1073 = vxor.u32 %v1072, 2147483648
    %v1074 = vmul.f32 %v1073, 1.442695
    %v1075 = vpow.pop %v1074
    %v1076 = vadd.f32 %v1075, 1.0
    %v1077 = vrcp.pop %v1076
    %v1078 = vmul.f32 %v1076, %v1077
    %v1079 = vsub.f32 1.0, %v1078
    %v1080 = vmul.f32 %v1077, %v1079
    %v1081 = vadd.f32 %v1077, %v1080
    %vm1082 = vweird.f32 %v1076
    %vm1083 = vweird.f32 %v1077
    %vm1084 = vmor %vm1082, %vm1083
    %v1085 = vsel %vm1084, %v1077, %v1081
    %v1086 = vand.u32 2147483647, %v1076
    %vm1087 = vcmp.eq.f32.partialorder %v1086, 8.507059e+37
    %v1088 = vand.u32 %v1076, 2147483648
    %v1089 = vor.u32 1.1754944e-38, %v1088
    %v1090 = vsel %vm1087, %v1089, %v1085
    %v1091 = vmul.f32 1.0, %v1090
    %v1092 = vtanh.pop %v1072
    %v1093 = vsel %vm156, %v1092, %v1091
    %v1094 = vmul.f32 %v1093, %v949
    %1096 = vrot.lane.b32.xlu0 %v1093, 64
    %v1097 = vpop.permute.xlu0 %1096
    %v1099 = vmul.f32 %v1093, %v1097
    %1101 = vrot.lane.b32.xlu0 %v1099, 32
    %v1102 = vpop.permute.xlu0 %1101
    %v1104 = vadd.f32 %v1094, %v1102
    %v1105 = vtanh.pop %v1104
    %1107 = vrot.lane.b32.xlu0 %v1105, 64
    %v1108 = vpop.permute.xlu0 %1107
    %v1110 = vmul.f32 %v1093, %v1108
    %1111 = vmatpush.msra.mxu0 0.0
    %1112 = vmatpush.msra.mxu0 0.0
    %1113 = vmatpush.msra.mxu0 0.0
    %1114 = vmatpush.msra.mxu0 0.0
    %1115 = vmatpush.msra.mxu0 0.0
    %1116 = vmatpush.msra.mxu0 0.0
    %1117 = vmatpush.msra.mxu0 0.0
    %1118 = vmatpush.msra.mxu0 0.0
    %1119 = vmatpush.msra.mxu0 0.0
    %1120 = vmatpush.msra.mxu0 0.0
    %1121 = vmatpush.msra.mxu0 0.0
    %1122 = vmatpush.msra.mxu0 0.0
    %1123 = vmatpush.msra.mxu0 %v166
    %1124 = vmatpush.msra.mxu0 %v165
    %1125 = vmatpush.msra.mxu0 %v164
    %1126 = vmatpush.msra.mxu0 %v163
    %1127 = vmatmul.f32.gmra.mxu0 %v1025
    %v1128 = vpop.f32.mrf.mxu0
    %v1129 = vadd.f32 0.0, %v1128
    %1130 = vdwg.mxu0
    %v1132 = vrot.slane %v1129, 4
    %v1134 = vadd.f32 %v150, %v1132
    %v1135 = vxor.u32 %v1134, 2147483648
    %v1136 = vmul.f32 %v1135, 1.442695
    %v1137 = vpow.pop %v1136
    %v1138 = vadd.f32 %v1137, 1.0
    %v1139 = vrcp.pop %v1138
    %v1140 = vmul.f32 %v1138, %v1139
    %v1141 = vsub.f32 1.0, %v1140
    %v1142 = vmul.f32 %v1139, %v1141
    %v1143 = vadd.f32 %v1139, %v1142
    %vm1144 = vweird.f32 %v1138
    %vm1145 = vweird.f32 %v1139
    %vm1146 = vmor %vm1144, %vm1145
    %v1147 = vsel %vm1146, %v1139, %v1143
    %v1148 = vand.u32 2147483647, %v1138
    %vm1149 = vcmp.eq.f32.partialorder %v1148, 8.507059e+37
    %v1150 = vand.u32 %v1138, 2147483648
    %v1151 = vor.u32 1.1754944e-38, %v1150
    %v1152 = vsel %vm1149, %v1151, %v1147
    %v1153 = vmul.f32 1.0, %v1152
    %v1154 = vtanh.pop %v1134
    %v1155 = vsel %vm156, %v1154, %v1153
    %v1157 = vrot.slane %v1014, 6
    %v1159 = vmul.f32 %v1155, %v1157
    %1161 = vrot.lane.b32.xlu0 %v1155, 64
    %v1162 = vpop.permute.xlu0 %1161
    %v1164 = vmul.f32 %v1155, %v1162
    %1166 = vrot.lane.b32.xlu0 %v1164, 32
    %v1167 = vpop.permute.xlu0 %1166
    %v1169 = vadd.f32 %v1159, %v1167
    %v1170 = vtanh.pop %v1169
    %1172 = vrot.lane.b32.xlu0 %v1170, 64
    %v1173 = vpop.permute.xlu0 %1172
    %v1175 = vmul.f32 %v1155, %v1173
    %v1177 = vrot.slane %v1175, 4
    %1178 = vrot.lane.b32.xlu0 %v1177, 32
    %v1179 = vpop.permute.xlu0 %1178
    %v1180 = vsel %vm167, %v1179, 0
    %1182 = vmatpush.msra.mxu0 0.0
    %1183 = vmatpush.msra.mxu0 0.0
    %1184 = vmatpush.msra.mxu0 0.0
    %1185 = vmatpush.msra.mxu0 0.0
    %1186 = vmatpush.msra.mxu0 0.0
    %1187 = vmatpush.msra.mxu0 0.0
    %1188 = vmatpush.msra.mxu0 0.0
    %1189 = vmatpush.msra.mxu0 0.0
    %1190 = vmatpush.msra.mxu0 0.0
    %1191 = vmatpush.msra.mxu0 0.0
    %1192 = vmatpush.msra.mxu0 0.0
    %1193 = vmatpush.msra.mxu0 0.0
    %1194 = vmatpush.msra.mxu0 %v238
    %1195 = vmatpush.msra.mxu0 %v237
    %1196 = vmatpush.msra.mxu0 %v236
    %1197 = vmatpush.msra.mxu0 %v235
    %1198 = vmatmul.f32.gmra.mxu0 %v1180
    %v1199 = vpop.f32.mrf.mxu0
    %v1200 = vadd.f32 %v242, %v1199
    %1201 = vdwg.mxu0
    %1203 = vrot.lane.b32.xlu0 %v1110, 32
    %v1204 = vpop.permute.xlu0 %1203
    %v1205 = vsel %vm167, %v1204, 0
    %1207 = vmatpush.msra.mxu0 0.0
    %1208 = vmatpush.msra.mxu0 0.0
    %1209 = vmatpush.msra.mxu0 0.0
    %1210 = vmatpush.msra.mxu0 0.0
    %1211 = vmatpush.msra.mxu0 0.0
    %1212 = vmatpush.msra.mxu0 0.0
    %1213 = vmatpush.msra.mxu0 0.0
    %1214 = vmatpush.msra.mxu0 0.0
    %1215 = vmatpush.msra.mxu0 0.0
    %1216 = vmatpush.msra.mxu0 0.0
    %1217 = vmatpush.msra.mxu0 0.0
    %1218 = vmatpush.msra.mxu0 0.0
    %1219 = vmatpush.msra.mxu0 %v273
    %1220 = vmatpush.msra.mxu0 %v272
    %1221 = vmatpush.msra.mxu0 %v271
    %1222 = vmatpush.msra.mxu0 %v270
    %1223 = vmatmul.f32.gmra.mxu0 %v1205
    %v1224 = vpop.f32.mrf.mxu0
    %v1225 = vadd.f32 0.0, %v1224
    %1226 = vdwg.mxu0
    %v1227 = vadd.f32 %v1200, %v1225
    %v1228 = vxor.u32 %v1227, 2147483648
    %v1229 = vmul.f32 %v1228, 1.442695
    %v1230 = vpow.pop %v1229
    %v1231 = vadd.f32 %v1230, 1.0
    %v1232 = vrcp.pop %v1231
    %v1233 = vmul.f32 %v1231, %v1232
    %v1234 = vsub.f32 1.0, %v1233
    %v1235 = vmul.f32 %v1232, %v1234
    %v1236 = vadd.f32 %v1232, %v1235
    %vm1237 = vweird.f32 %v1231
    %vm1238 = vweird.f32 %v1232
    %vm1239 = vmor %vm1237, %vm1238
    %v1240 = vsel %vm1239, %v1232, %v1236
    %v1241 = vand.u32 2147483647, %v1231
    %vm1242 = vcmp.eq.f32.partialorder %v1241, 8.507059e+37
    %v1243 = vand.u32 %v1231, 2147483648
    %v1244 = vor.u32 1.1754944e-38, %v1243
    %v1245 = vsel %vm1242, %v1244, %v1240
    %v1246 = vmul.f32 1.0, %v1245
    %v1247 = vtanh.pop %v1227
    %v1248 = vsel %vm156, %v1247, %v1246
    %v1249 = vmul.f32 %v1248, %v1104
    %1251 = vrot.lane.b32.xlu0 %v1248, 64
    %v1252 = vpop.permute.xlu0 %1251
    %v1254 = vmul.f32 %v1248, %v1252
    %1256 = vrot.lane.b32.xlu0 %v1254, 32
    %v1257 = vpop.permute.xlu0 %1256
    %v1259 = vadd.f32 %v1249, %v1257
    %v1260 = vtanh.pop %v1259
    %1262 = vrot.lane.b32.xlu0 %v1260, 64
    %v1263 = vpop.permute.xlu0 %1262
    %v1265 = vmul.f32 %v1248, %v1263
    %1266 = vmatpush.msra.mxu0 0.0
    %1267 = vmatpush.msra.mxu0 0.0
    %1268 = vmatpush.msra.mxu0 0.0
    %1269 = vmatpush.msra.mxu0 0.0
    %1270 = vmatpush.msra.mxu0 0.0
    %1271 = vmatpush.msra.mxu0 0.0
    %1272 = vmatpush.msra.mxu0 0.0
    %1273 = vmatpush.msra.mxu0 0.0
    %1274 = vmatpush.msra.mxu0 0.0
    %1275 = vmatpush.msra.mxu0 0.0
    %1276 = vmatpush.msra.mxu0 0.0
    %1277 = vmatpush.msra.mxu0 0.0
    %1278 = vmatpush.msra.mxu0 %v166
    %1279 = vmatpush.msra.mxu0 %v165
    %1280 = vmatpush.msra.mxu0 %v164
    %1281 = vmatpush.msra.mxu0 %v163
    %1282 = vmatmul.f32.gmra.mxu0 %v1180
    %v1283 = vpop.f32.mrf.mxu0
    %v1284 = vadd.f32 0.0, %v1283
    %1285 = vdwg.mxu0
    %v1287 = vrot.slane %v1284, 2
    %v1289 = vadd.f32 %v150, %v1287
    %v1290 = vxor.u32 %v1289, 2147483648
    %v1291 = vmul.f32 %v1290, 1.442695
    %v1292 = vpow.pop %v1291
    %v1293 = vadd.f32 %v1292, 1.0
    %v1294 = vrcp.pop %v1293
    %v1295 = vmul.f32 %v1293, %v1294
    %v1296 = vsub.f32 1.0, %v1295
    %v1297 = vmul.f32 %v1294, %v1296
    %v1298 = vadd.f32 %v1294, %v1297
    %vm1299 = vweird.f32 %v1293
    %vm1300 = vweird.f32 %v1294
    %vm1301 = vmor %vm1299, %vm1300
    %v1302 = vsel %vm1301, %v1294, %v1298
    %v1303 = vand.u32 2147483647, %v1293
    %vm1304 = vcmp.eq.f32.partialorder %v1303, 8.507059e+37
    %v1305 = vand.u32 %v1293, 2147483648
    %v1306 = vor.u32 1.1754944e-38, %v1305
    %v1307 = vsel %vm1304, %v1306, %v1302
    %v1308 = vmul.f32 1.0, %v1307
    %v1309 = vtanh.pop %v1289
    %v1310 = vsel %vm156, %v1309, %v1308
    %v1312 = vrot.slane %v1169, 6
    %v1314 = vmul.f32 %v1310, %v1312
    %1316 = vrot.lane.b32.xlu0 %v1310, 64
    %v1317 = vpop.permute.xlu0 %1316
    %v1319 = vmul.f32 %v1310, %v1317
    %1321 = vrot.lane.b32.xlu0 %v1319, 32
    %v1322 = vpop.permute.xlu0 %1321
    %v1324 = vadd.f32 %v1314, %v1322
    %v1325 = vtanh.pop %v1324
    %1327 = vrot.lane.b32.xlu0 %v1325, 64
    %v1328 = vpop.permute.xlu0 %1327
    %v1330 = vmul.f32 %v1310, %v1328
    %v1332 = vrot.slane %v1330, 6
    %1333 = vrot.lane.b32.xlu0 %v1332, 32
    %v1334 = vpop.permute.xlu0 %1333
    %v1335 = vsel %vm167, %v1334, 0
    %1337 = vmatpush.msra.mxu0 0.0
    %1338 = vmatpush.msra.mxu0 0.0
    %1339 = vmatpush.msra.mxu0 0.0
    %1340 = vmatpush.msra.mxu0 0.0
    %1341 = vmatpush.msra.mxu0 0.0
    %1342 = vmatpush.msra.mxu0 0.0
    %1343 = vmatpush.msra.mxu0 0.0
    %1344 = vmatpush.msra.mxu0 0.0
    %1345 = vmatpush.msra.mxu0 0.0
    %1346 = vmatpush.msra.mxu0 0.0
    %1347 = vmatpush.msra.mxu0 0.0
    %1348 = vmatpush.msra.mxu0 0.0
    %1349 = vmatpush.msra.mxu0 %v238
    %1350 = vmatpush.msra.mxu0 %v237
    %1351 = vmatpush.msra.mxu0 %v236
    %1352 = vmatpush.msra.mxu0 %v235
    %1353 = vmatmul.f32.gmra.mxu0 %v1335
    %v1354 = vpop.f32.mrf.mxu0
    %v1355 = vadd.f32 %v242, %v1354
    %1356 = vdwg.mxu0
    %1358 = vrot.lane.b32.xlu0 %v1265, 32
    %v1359 = vpop.permute.xlu0 %1358
    %v1360 = vsel %vm167, %v1359, 0
    %1362 = vmatpush.msra.mxu0 0.0
    %1363 = vmatpush.msra.mxu0 0.0
    %1364 = vmatpush.msra.mxu0 0.0
    %1365 = vmatpush.msra.mxu0 0.0
    %1366 = vmatpush.msra.mxu0 0.0
    %1367 = vmatpush.msra.mxu0 0.0
    %1368 = vmatpush.msra.mxu0 0.0
    %1369 = vmatpush.msra.mxu0 0.0
    %1370 = vmatpush.msra.mxu0 0.0
    %1371 = vmatpush.msra.mxu0 0.0
    %1372 = vmatpush.msra.mxu0 0.0
    %1373 = vmatpush.msra.mxu0 0.0
    %1374 = vmatpush.msra.mxu0 %v273
    %1375 = vmatpush.msra.mxu0 %v272
    %1376 = vmatpush.msra.mxu0 %v271
    %1377 = vmatpush.msra.mxu0 %v270
    %1378 = vmatmul.f32.gmra.mxu0 %v1360
    %v1379 = vpop.f32.mrf.mxu0
    %v1380 = vadd.f32 0.0, %v1379
    %1381 = vdwg.mxu0
    %v1382 = vadd.f32 %v1355, %v1380
    %v1383 = vxor.u32 %v1382, 2147483648
    %v1384 = vmul.f32 %v1383, 1.442695
    %v1385 = vpow.pop %v1384
    %v1386 = vadd.f32 %v1385, 1.0
    %v1387 = vrcp.pop %v1386
    %v1388 = vmul.f32 %v1386, %v1387
    %v1389 = vsub.f32 1.0, %v1388
    %v1390 = vmul.f32 %v1387, %v1389
    %v1391 = vadd.f32 %v1387, %v1390
    %vm1392 = vweird.f32 %v1386
    %vm1393 = vweird.f32 %v1387
    %vm1394 = vmor %vm1392, %vm1393
    %v1395 = vsel %vm1394, %v1387, %v1391
    %v1396 = vand.u32 2147483647, %v1386
    %vm1397 = vcmp.eq.f32.partialorder %v1396, 8.507059e+37
    %v1398 = vand.u32 %v1386, 2147483648
    %v1399 = vor.u32 1.1754944e-38, %v1398
    %v1400 = vsel %vm1397, %v1399, %v1395
    %v1401 = vmul.f32 1.0, %v1400
    %v1402 = vtanh.pop %v1382
    %v1403 = vsel %vm156, %v1402, %v1401
    %v1404 = vmul.f32 %v1403, %v1259
    %1406 = vrot.lane.b32.xlu0 %v1403, 64
    %v1407 = vpop.permute.xlu0 %1406
    %v1409 = vmul.f32 %v1403, %v1407
    %1411 = vrot.lane.b32.xlu0 %v1409, 32
    %v1412 = vpop.permute.xlu0 %1411
    %v1414 = vadd.f32 %v1404, %v1412
    %v1415 = vtanh.pop %v1414
    %1417 = vrot.lane.b32.xlu0 %v1415, 64
    %v1418 = vpop.permute.xlu0 %1417
    %v1420 = vmul.f32 %v1403, %v1418
    %1421 = vrot.lane.b32.xlu0 %v1330, 32
    %v1422 = vpop.permute.xlu0 %1421
    %vm1424 = vcmask 261126
    %1425 = vst.msk [vmem:[#allocation12 - $0x6] sm:$0xc0] %vm1424, %v1422
    %1427 = vrot.lane.b32.xlu0 %v1324, 96
    %v1428 = vpop.permute.xlu0 %1427
    %1430 = vst.msk [vmem:[#allocation14 - $0x6] sm:$0xc0] %vm1424, %v1428
    %1432 = vrot.lane.b32.xlu0 %v1420, 32
    %v1433 = vpop.permute.xlu0 %1432
    %s1435 = scalar_lea.vmem [#allocation12], 2
    %vm1436 = vcmask 254976
    %1437 = vst.msk [vmem:[%s1435] sm:$0x3] %vm1436, %v1433
    %1439 = vrot.lane.b32.xlu0 %v1414, 96
    %v1440 = vpop.permute.xlu0 %1439
    %s1442 = scalar_lea.vmem [#allocation14], 2
    %1443 = vst.msk [vmem:[%s1442] sm:$0x3] %vm1436, %v1440
    %v1444 = vld [vmem:[%s6] sm:$0xff]
    %v1445 = vld [vmem:[%s6 + $0x8] sm:$0xff]
    %v1446 = vld [vmem:[%s6 + $0x10] sm:$0xff]
    %v1447 = vld [vmem:[%s6 + $0x18] sm:$0xff]
    %v1448 = vld [vmem:[#allocation10] sm:$0x1]
    %v1450 = vperm.slane %v1448, 0
    %v1452 = vsel %vm167, %v1433, 0
    %1454 = vmatpush.msra.mxu0 0.0
    %1455 = vmatpush.msra.mxu0 0.0
    %1456 = vmatpush.msra.mxu0 0.0
    %1457 = vmatpush.msra.mxu0 0.0
    %1458 = vmatpush.msra.mxu0 0.0
    %1459 = vmatpush.msra.mxu0 0.0
    %1460 = vmatpush.msra.mxu0 0.0
    %1461 = vmatpush.msra.mxu0 0.0
    %1462 = vmatpush.msra.mxu0 0.0
    %1463 = vmatpush.msra.mxu0 0.0
    %1464 = vmatpush.msra.mxu0 0.0
    %1465 = vmatpush.msra.mxu0 0.0
    %1466 = vmatpush.msra.mxu0 %v1447
    %1467 = vmatpush.msra.mxu0 %v1446
    %1468 = vmatpush.msra.mxu0 %v1445
    %1469 = vmatpush.msra.mxu0 %v1444
    %1470 = vmatmul.f32.gmra.mxu0 %v1452
    %v1471 = vpop.f32.mrf.mxu0
    %v1472 = vadd.f32 %v1450, %v1471
    %1473 = vdwg.mxu0
    %vm1474 = vcmask 25600
    %1475 = vst.msk [vmem:[#allocation11] sm:$0x3] %vm1474, %v1472
    // Predicated region
    $region62: #{tpu_custom_call.1} parent=1 // pred_check
      _
    $region63: #{tpu_custom_call.1} parent=1 // pred_check_branch
      %1477 = sbr.rel (0) target = $region65
    $region64: #{tpu_custom_call.1} parent=1 // pred_region
      %1479 = vsyncadd [#allocation4], 0
      %s1481 = sshll.u32 [#allocation11], 4
      %s1482 = int_to_ptr.vmem [resolvable:$true] %s1481
      %s1483 = sshll.u32 %s10, 4
      %s1484 = int_to_ptr.hbm [resolvable:$true] %s1483
      %1486 = dma.vmem_to_hbm [thread:$0]  %s1482, 32, %s1484, [#allocation4]
    $region65: #{tpu_custom_call.1} parent=1 // pred_fallthru
      _
    // Predicated region
    $region66: #{tpu_custom_call.1} parent=1 // pred_check
      _
    $region67: #{tpu_custom_call.1} parent=1 // pred_check_branch
      %1488 = sbr.rel (0) target = $region69
    $region68: #{tpu_custom_call.1} parent=1 // pred_region
      %1490 = vsyncadd [#allocation13], 0
      %s1491 = sshll.u32 [#allocation12], 4
      %s1492 = int_to_ptr.vmem [resolvable:$true] %s1491
      %s1493 = sshll.u32 %s11, 4
      %s1494 = int_to_ptr.hbm [resolvable:$true] %s1493
      %1499 = dma.vmem_to_hbm [thread:$0]  %s1492, 64, %s1494, [#allocation13], 32, 32, 2
    $region69: #{tpu_custom_call.1} parent=1 // pred_fallthru
      _
    // Predicated region
    $region70: #{tpu_custom_call.1} parent=1 // pred_check
      _
    $region71: #{tpu_custom_call.1} parent=1 // pred_check_branch
      %1501 = sbr.rel (0) target = $region73
    $region72: #{tpu_custom_call.1} parent=1 // pred_region
      %1503 = vsyncadd [#allocation13], 0
      %s1504 = sshll.u32 [#allocation14], 4
      %s1505 = int_to_ptr.vmem [resolvable:$true] %s1504
      %s1506 = sshll.u32 %s12, 4
      %s1507 = int_to_ptr.hbm [resolvable:$true] %s1506
      %1512 = dma.vmem_to_hbm [thread:$0]  %s1505, 64, %s1507, [#allocation13], 32, 32, 2
    $region73: #{tpu_custom_call.1} parent=1 // pred_fallthru
      _
    // Predicated region
    $region74: #{tpu_custom_call.1} parent=1 // pred_check
      _
    $region75: #{tpu_custom_call.1} parent=1 // pred_check_branch
      %1514 = sbr.rel (0) target = $region77
    $region76: #{tpu_custom_call.1} parent=1 // pred_region
      %1516 = dma.done [#allocation4], 32
    $region77: #{tpu_custom_call.1} parent=1 // pred_fallthru
      _
    // Predicated region
    $region78: #{tpu_custom_call.1} parent=1 // pred_check
      _
    $region79: #{tpu_custom_call.1} parent=1 // pred_check_branch
      %1518 = sbr.rel (0) target = $region81
    $region80: #{tpu_custom_call.1} parent=1 // pred_region
      %1520 = dma.done [#allocation13], 64
    $region81: #{tpu_custom_call.1} parent=1 // pred_fallthru
      _
    // Predicated region
    $region82: #{tpu_custom_call.1} parent=1 // pred_check
      _
    $region83: #{tpu_custom_call.1} parent=1 // pred_check_branch
      %1522 = sbr.rel (0) target = $region85
    $region84: #{tpu_custom_call.1} parent=1 // pred_region
      %1524 = dma.done [#allocation13], 64
    $region85: #{tpu_custom_call.1} parent=1 // pred_fallthru
      _
    %1525 = vsyncpa [#allocation3], 1
    %1526 = vsyncpa [#allocation6], 1
    %1527 = vsyncpa [#allocation9], 1
    %1528 = vsyncpa [#allocation4], 1
    %1529 = vsyncpa [#allocation13], 1

</llo_original>
